<compile_context>
chip_gen: v7x
topology: tpu7x:2x2x1
jax: 0.10.0
libtpu: 0.0.40
codegen_flags: <defaults>
</compile_context>

<pallas_src>
import jax
import jax.numpy as jnp
import numpy as np
from jax.experimental import pallas as pl
from jax.experimental.pallas import tpu as pltpu

EPS = 1e-5  # nn.LayerNorm default eps


def _attention_pool_kernel(x_ref, g_ref, b_ref, wkq_ref, wv_ref, wp_ref,
                           pb_ref, out_ref):
    TB, N, C = x_ref.shape

    # ---- LayerNorm over channels (f32 math, biased variance, affine) ----
    x = x_ref[...].astype(jnp.float32)                           # (TB, N, C)
    mean = jnp.mean(x, axis=-1, keepdims=True)
    var = jnp.mean(jnp.square(x - mean), axis=-1, keepdims=True)
    xn = (x - mean) * jax.lax.rsqrt(var + EPS)
    xn = xn * g_ref[...] + b_ref[...]                            # (TB, N, C)

    # ---- folded k path: logit[t, n] = xn[t, n, :] . (q @ Wk)  (f32, VPU) ----
    logits = jnp.sum(xn * wkq_ref[...], axis=-1, keepdims=True)  # (TB, N, 1)

    # ---- per-image softmax over the N tokens (sublane axis) ----
    m = jnp.max(logits, axis=1, keepdims=True)                   # (TB, 1, 1)
    e = jnp.exp(logits - m)                                      # (TB, N, 1)
    s = jnp.sum(e, axis=1, keepdims=True)                        # (TB, 1, 1)
    attn = e * pl.reciprocal(s, approx=True)                     # (TB, N, 1)

    # ---- v projection: flatten the batch tile for MXU row fill ----
    # (N = H*W is a multiple of 8 for the shapes used here, so this reshape is
    #  a no-op relayout.)
    xn_flat = xn.reshape(TB * N, C).astype(wv_ref.dtype)
    v = jnp.dot(xn_flat, wv_ref[...],
                preferred_element_type=jnp.float32).reshape(TB, N, C)

    # ---- attention-weighted pooling + output projection ----
    pooled = jnp.sum(attn * v, axis=1)                           # (TB, C)
    out = jnp.dot(pooled.astype(wp_ref.dtype), wp_ref[...],
                  preferred_element_type=jnp.float32) + pb_ref[...]
    out_ref[...] = out.astype(out_ref.dtype)                     # (TB, C)


def attention_pool2d(x_nchw, cls_q, params, *, tile_b=8,
                     compute_dtype=jnp.bfloat16):
    """x_nchw: (B, C, H, W), cls_q: (1, 1, C)  ->  (B, C)."""
    B, C, H, W = x_nchw.shape
    N = H * W
    f32 = jnp.float32

    # ---- shared class-query path, computed once outside the kernel ----
    q = (cls_q.reshape(1, C).astype(f32) @ params["q_w"].astype(f32).T
         + params["q_b"].astype(f32).reshape(1, C))              # (1, C)
    k_w = params["vk_w"][:C, :].astype(f32)   # PyTorch vk layout: k rows first
    wkq = (q @ k_w).reshape(1, 1, C)          # logits vector in xn space (f32)
    # (q . b_k) shifts every logit equally -> cancels in softmax -> dropped.

    v_w = params["vk_w"][C:, :]
    v_b = params["vk_b"][C:].astype(f32)
    wv = v_w.T.astype(compute_dtype)          # (C_in, C_out)
    wp = params["proj_w"].T.astype(compute_dtype)                # (C, C)
    # attn rows sum to 1, so the v bias folds into the final bias:
    pb_eff = (v_b @ params["proj_w"].astype(f32).T
              + params["proj_b"].astype(f32)).reshape(1, C)

    gamma = params["norm_w"].astype(f32).reshape(1, 1, C)
    beta = params["norm_b"].astype(f32).reshape(1, 1, C)

    # NCHW -> (B, N, C), fused with the downcast to the MXU operand dtype so
    # the relayout pass reads f32 once and writes half-width data.
    x = x_nchw.reshape(B, C, N).transpose(0, 2, 1).astype(compute_dtype)

    # ---- batch tiling (TB images per grid step) ----
    tb = max(1, min(tile_b, B))
    b_pad = ((B + tb - 1) // tb) * tb
    if b_pad != B:
        x = jnp.pad(x, ((0, b_pad - B), (0, 0), (0, 0)))

    # Raise the scoped-VMEM limit only when the resident weights + pipeline
    # buffers actually need it (large C); compiler defaults are fine here.
    # TODO(synk): for C >= ~2048 on v7x (64 MiB VMEM) also tile wv/wp along
    # their output dim with an extra "arbitrary" grid axis.
    isz = jnp.dtype(compute_dtype).itemsize
    vmem_est = (2 * tb * N * C * isz + 2 * tb * C * 4
                + 2 * 2 * C * C * isz + 16 * C * 4 + (4 << 20))
    vmem_limit = int(min(vmem_est, 64 << 20)) if vmem_est > (16 << 20) else None

    def chan_vec():
        return pl.BlockSpec((1, 1, C), lambda i: (0, 0, 0))

    out = pl.pallas_call(
        _attention_pool_kernel,
        out_shape=jax.ShapeDtypeStruct((b_pad, C), x_nchw.dtype),
        grid_spec=pltpu.PrefetchScalarGridSpec(
            num_scalar_prefetch=0,
            grid=(b_pad // tb,),
            in_specs=[
                pl.BlockSpec((tb, N, C), lambda i: (i, 0, 0)),   # x tokens
                chan_vec(),                                      # LN gamma
                chan_vec(),                                      # LN beta
                chan_vec(),                                      # folded q@Wk
                # Constant-index weights; if the pipeliner double-buffers them
                # at large C, pipeline_mode=pl.Buffered(1) halves their VMEM.
                pl.BlockSpec((C, C), lambda i: (0, 0)),          # Wv (in, out)
                pl.BlockSpec((C, C), lambda i: (0, 0)),          # Wp (in, out)
                pl.BlockSpec((1, C), lambda i: (0, 0)),          # fused bias
            ],
            out_specs=pl.BlockSpec((tb, C), lambda i: (i, 0)),
        ),
        compiler_params=pltpu.CompilerParams(
            dimension_semantics=("parallel",),
            vmem_limit_bytes=vmem_limit),
    )(x, gamma, beta, wkq, wv, wp, pb_eff)
    return out[:B]


def reference(x_nchw, cls_q, p):
    """Pure-JAX mirror of the PyTorch forward (for verification)."""
    B, C, H, W = x_nchw.shape
    x = x_nchw.reshape(B, C, -1).transpose(0, 2, 1)              # (B, N, C)
    mean = x.mean(-1, keepdims=True)
    var = ((x - mean) ** 2).mean(-1, keepdims=True)
    xn = (x - mean) / jnp.sqrt(var + EPS) * p["norm_w"] + p["norm_b"]
    q = cls_q.reshape(1, 1, C) @ p["q_w"].T + p["q_b"]
    q = jnp.broadcast_to(q, (B, 1, C))
    kv = xn @ p["vk_w"].T + p["vk_b"]
    k, v = kv[..., :C], kv[..., C:]
    attn = jax.nn.softmax(q @ k.transpose(0, 2, 1), axis=-1)
    pooled = (attn @ v).reshape(B, C)
    return pooled @ p["proj_w"].T + p["proj_b"]


if __name__ == "__main__":
    # Realistic small shape: C multiple of 128, N = H*W multiple of 8,
    # B/tile_b = 2 grid steps (exercises the parallel batch axis).
    B, C, H, W = 16, 128, 8, 8

    key = jax.random.PRNGKey(0)
    keys = jax.random.split(key, 10)
    params = {
        "norm_w": 1.0 + 0.1 * jax.random.normal(keys[0], (C,), jnp.float32),
        "norm_b": 0.1 * jax.random.normal(keys[1], (C,), jnp.float32),
        "q_w": 0.1 * jax.random.normal(keys[2], (C, C), jnp.float32),
        "q_b": 0.1 * jax.random.normal(keys[3], (C,), jnp.float32),
        "vk_w": 0.1 * jax.random.normal(keys[4], (2 * C, C), jnp.float32),
        "vk_b": 0.1 * jax.random.normal(keys[5], (2 * C,), jnp.float32),
        "proj_w": 0.1 * jax.random.normal(keys[6], (C, C), jnp.float32),
        "proj_b": 0.1 * jax.random.normal(keys[7], (C,), jnp.float32),
    }
    x = jax.random.normal(keys[8], (B, C, H, W), jnp.float32)
    cls_q = jax.random.normal(keys[9], (1, 1, C), jnp.float32)

    pool = jax.jit(attention_pool2d, static_argnames=("tile_b", "compute_dtype"))

    # Structural check with f32 operands (only the softmax approx-reciprocal
    # and the algebraic refolds differ from the reference).
    out_f32 = jax.block_until_ready(pool(x, cls_q, params,
                                         compute_dtype=jnp.float32))
    ref_f32 = jax.block_until_ready(reference(x, cls_q, params))
    assert out_f32.shape == (B, C)
    np.testing.assert_allclose(np.asarray(out_f32), np.asarray(ref_f32),
                               rtol=1e-2, atol=1e-2)

    # Production config: bf16 MXU operands, f32 LN/softmax/accumulation.
    # Compare against the reference evaluated on the same bf16-quantised x.
    out_bf16 = jax.block_until_ready(pool(x, cls_q, params,
                                          compute_dtype=jnp.bfloat16))
    ref_bf16 = jax.block_until_ready(
        reference(x.astype(jnp.bfloat16).astype(jnp.float32), cls_q, params))
    np.testing.assert_allclose(np.asarray(out_bf16), np.asarray(ref_bf16),
                               rtol=5e-2, atol=8e-2)

    print("KERNEL_OK")
</pallas_src>

<mosaic_0001>
module attributes {stable_mosaic.version = 11 : i64} {
  func.func @_attention_pool_kernel(%arg0: i32, %arg1: memref<8x64x128xf32, #tpu.memory_space<vmem>>, %arg2: memref<1x1x128xf32, #tpu.memory_space<vmem>>, %arg3: memref<1x1x128xf32, #tpu.memory_space<vmem>>, %arg4: memref<1x1x128xf32, #tpu.memory_space<vmem>>, %arg5: memref<128x128xf32, #tpu.memory_space<vmem>>, %arg6: memref<128x128xf32, #tpu.memory_space<vmem>>, %arg7: memref<1x128xf32, #tpu.memory_space<vmem>>, %arg8: memref<8x128xf32, #tpu.memory_space<vmem>>) attributes {dimension_semantics = [#tpu.dimension_semantics<parallel>], iteration_bounds = array<i64: 2>, scalar_prefetch = 0 : i64, scratch_operands = 0 : i64, tpu.core_type = #tpu.core_type<tc>, window_params = [{transform_indices = @transform_0, window_bounds = array<i64: 8, 64, 128>}, {pipeline_mode = #tpu.pipeline_mode<synchronous>, transform_indices = @transform_1, window_bounds = array<i64: 1, 1, 128>}, {pipeline_mode = #tpu.pipeline_mode<synchronous>, transform_indices = @transform_2, window_bounds = array<i64: 1, 1, 128>}, {pipeline_mode = #tpu.pipeline_mode<synchronous>, transform_indices = @transform_3, window_bounds = array<i64: 1, 1, 128>}, {pipeline_mode = #tpu.pipeline_mode<synchronous>, transform_indices = @transform_4, window_bounds = array<i64: 128, 128>}, {pipeline_mode = #tpu.pipeline_mode<synchronous>, transform_indices = @transform_5, window_bounds = array<i64: 128, 128>}, {pipeline_mode = #tpu.pipeline_mode<synchronous>, transform_indices = @transform_6, window_bounds = array<i64: 1, 128>}, {transform_indices = @transform_7, window_bounds = array<i64: 8, 128>}]} {
    %c0 = arith.constant 0 : index
    %c0_0 = arith.constant 0 : index
    %c0_1 = arith.constant 0 : index
    %0 = vector.load %arg1[%c0, %c0_0, %c0_1] : memref<8x64x128xf32, #tpu.memory_space<vmem>>, vector<8x64x128xf32>
    %cst = arith.constant dense<0.000000e+00> : vector<8x64xf32>
    %1 = vector.multi_reduction <add>, %0, %cst [2] : vector<8x64x128xf32> to vector<8x64xf32>
    %2 = vector.shape_cast %1 : vector<8x64xf32> to vector<8x64x1xf32>
    %cst_2 = arith.constant 1.280000e+02 : f32
    %3 = vector.broadcast %cst_2 : f32 to vector<8x64x1xf32>
    %4 = arith.divf %2, %3 : vector<8x64x1xf32>
    %5 = vector.broadcast %4 : vector<8x64x1xf32> to vector<8x64x128xf32>
    %6 = arith.subf %0, %5 : vector<8x64x128xf32>
    %7 = arith.mulf %6, %6 : vector<8x64x128xf32>
    %cst_3 = arith.constant dense<0.000000e+00> : vector<8x64xf32>
    %8 = vector.multi_reduction <add>, %7, %cst_3 [2] : vector<8x64x128xf32> to vector<8x64xf32>
    %9 = vector.shape_cast %8 : vector<8x64xf32> to vector<8x64x1xf32>
    %cst_4 = arith.constant 1.280000e+02 : f32
    %10 = vector.broadcast %cst_4 : f32 to vector<8x64x1xf32>
    %11 = arith.divf %9, %10 : vector<8x64x1xf32>
    %12 = vector.broadcast %4 : vector<8x64x1xf32> to vector<8x64x128xf32>
    %13 = arith.subf %0, %12 : vector<8x64x128xf32>
    %cst_5 = arith.constant 9.99999974E-6 : f32
    %14 = vector.broadcast %cst_5 : f32 to vector<8x64x1xf32>
    %15 = arith.addf %11, %14 : vector<8x64x1xf32>
    %16 = math.rsqrt %15 : vector<8x64x1xf32>
    %17 = vector.broadcast %16 : vector<8x64x1xf32> to vector<8x64x128xf32>
    %18 = arith.mulf %13, %17 : vector<8x64x128xf32>
    %c0_6 = arith.constant 0 : index
    %c0_7 = arith.constant 0 : index
    %c0_8 = arith.constant 0 : index
    %19 = vector.load %arg2[%c0_6, %c0_7, %c0_8] : memref<1x1x128xf32, #tpu.memory_space<vmem>>, vector<1x1x128xf32>
    %20 = vector.broadcast %19 : vector<1x1x128xf32> to vector<8x64x128xf32>
    %21 = arith.mulf %18, %20 : vector<8x64x128xf32>
    %c0_9 = arith.constant 0 : index
    %c0_10 = arith.constant 0 : index
    %c0_11 = arith.constant 0 : index
    %22 = vector.load %arg3[%c0_9, %c0_10, %c0_11] : memref<1x1x128xf32, #tpu.memory_space<vmem>>, vector<1x1x128xf32>
    %23 = vector.broadcast %22 : vector<1x1x128xf32> to vector<8x64x128xf32>
    %24 = arith.addf %21, %23 : vector<8x64x128xf32>
    %c0_12 = arith.constant 0 : index
    %c0_13 = arith.constant 0 : index
    %c0_14 = arith.constant 0 : index
    %25 = vector.load %arg4[%c0_12, %c0_13, %c0_14] : memref<1x1x128xf32, #tpu.memory_space<vmem>>, vector<1x1x128xf32>
    %26 = vector.broadcast %25 : vector<1x1x128xf32> to vector<8x64x128xf32>
    %27 = arith.mulf %24, %26 : vector<8x64x128xf32>
    %cst_15 = arith.constant dense<0.000000e+00> : vector<8x64xf32>
    %28 = vector.multi_reduction <add>, %27, %cst_15 [2] : vector<8x64x128xf32> to vector<8x64xf32>
    %29 = vector.shape_cast %28 : vector<8x64xf32> to vector<8x64x1xf32>
    %cst_16 = arith.constant dense<0xFF800000> : vector<8x1xf32>
    %30 = vector.multi_reduction <maximumf>, %29, %cst_16 [1] : vector<8x64x1xf32> to vector<8x1xf32>
    %31 = vector.shape_cast %30 : vector<8x1xf32> to vector<8x1x1xf32>
    %32 = vector.broadcast %31 : vector<8x1x1xf32> to vector<8x64x1xf32>
    %33 = arith.subf %29, %32 : vector<8x64x1xf32>
    %34 = math.exp %33 : vector<8x64x1xf32>
    %cst_17 = arith.constant dense<0.000000e+00> : vector<8x1xf32>
    %35 = vector.multi_reduction <add>, %34, %cst_17 [1] : vector<8x64x1xf32> to vector<8x1xf32>
    %36 = vector.shape_cast %35 : vector<8x1xf32> to vector<8x1x1xf32>
    %37 = tpu.reciprocal %36 {approx = true} : vector<8x1x1xf32> -> vector<8x1x1xf32>
    %38 = vector.broadcast %37 : vector<8x1x1xf32> to vector<8x64x1xf32>
    %39 = arith.mulf %34, %38 : vector<8x64x1xf32>
    %40 = vector.shape_cast %24 : vector<8x64x128xf32> to vector<512x128xf32>
    %c0_18 = arith.constant 0 : index
    %c0_19 = arith.constant 0 : index
    %41 = vector.load %arg5[%c0_18, %c0_19] : memref<128x128xf32, #tpu.memory_space<vmem>>, vector<128x128xf32>
    %cst_20 = arith.constant dense<0.000000e+00> : vector<512x128xf32>
    %42 = tpu.matmul %40, %41, %cst_20 {dimension_numbers = #tpu.dot_dimension_numbers<[1], [0], [0], [1], [0, 0, 1, 1], [], []>} : vector<512x128xf32>, vector<128x128xf32>, vector<512x128xf32> -> vector<512x128xf32>
    %43 = vector.shape_cast %42 : vector<512x128xf32> to vector<8x64x128xf32>
    %44 = vector.broadcast %39 : vector<8x64x1xf32> to vector<8x64x128xf32>
    %45 = arith.mulf %44, %43 : vector<8x64x128xf32>
    %cst_21 = arith.constant dense<0.000000e+00> : vector<8x128xf32>
    %46 = vector.multi_reduction <add>, %45, %cst_21 [1] : vector<8x64x128xf32> to vector<8x128xf32>
    %c0_22 = arith.constant 0 : index
    %c0_23 = arith.constant 0 : index
    %47 = vector.load %arg6[%c0_22, %c0_23] : memref<128x128xf32, #tpu.memory_space<vmem>>, vector<128x128xf32>
    %cst_24 = arith.constant dense<0.000000e+00> : vector<8x128xf32>
    %48 = tpu.matmul %46, %47, %cst_24 {dimension_numbers = #tpu.dot_dimension_numbers<[1], [0], [0], [1], [0, 0, 1, 1], [], []>} : vector<8x128xf32>, vector<128x128xf32>, vector<8x128xf32> -> vector<8x128xf32>
    %c0_25 = arith.constant 0 : index
    %c0_26 = arith.constant 0 : index
    %49 = vector.load %arg7[%c0_25, %c0_26] : memref<1x128xf32, #tpu.memory_space<vmem>>, vector<1x128xf32>
    %50 = vector.broadcast %49 : vector<1x128xf32> to vector<8x128xf32>
    %51 = arith.addf %48, %50 : vector<8x128xf32>
    %c0_27 = arith.constant 0 : index
    %c0_28 = arith.constant 0 : index
    %52 = vector.load %arg8[%c0_27, %c0_28] : memref<8x128xf32, #tpu.memory_space<vmem>>, vector<8x128xf32>
    tpu.vector_store %arg8[%c0_27, %c0_28], %51 {strides = array<i32>} : memref<8x128xf32, #tpu.memory_space<vmem>>, vector<8x128xf32>,
    return
  }
  func.func @transform_0(%arg0: i32) -> (i32, i32, i32) {
    %c0_i32 = arith.constant 0 : i32
    %c0_i32_0 = arith.constant 0 : i32
    %c0_i32_1 = arith.constant 0 : i32
    return %arg0, %c0_i32, %c0_i32_0 : i32, i32, i32
  }
  func.func @transform_1(%arg0: i32) -> (i32, i32, i32) {
    %c0_i32 = arith.constant 0 : i32
    %c0_i32_0 = arith.constant 0 : i32
    %c0_i32_1 = arith.constant 0 : i32
    %c0_i32_2 = arith.constant 0 : i32
    return %c0_i32, %c0_i32_0, %c0_i32_1 : i32, i32, i32
  }
  func.func @transform_2(%arg0: i32) -> (i32, i32, i32) {
    %c0_i32 = arith.constant 0 : i32
    %c0_i32_0 = arith.constant 0 : i32
    %c0_i32_1 = arith.constant 0 : i32
    %c0_i32_2 = arith.constant 0 : i32
    return %c0_i32, %c0_i32_0, %c0_i32_1 : i32, i32, i32
  }
  func.func @transform_3(%arg0: i32) -> (i32, i32, i32) {
    %c0_i32 = arith.constant 0 : i32
    %c0_i32_0 = arith.constant 0 : i32
    %c0_i32_1 = arith.constant 0 : i32
    %c0_i32_2 = arith.constant 0 : i32
    return %c0_i32, %c0_i32_0, %c0_i32_1 : i32, i32, i32
  }
  func.func @transform_4(%arg0: i32) -> (i32, i32) {
    %c0_i32 = arith.constant 0 : i32
    %c0_i32_0 = arith.constant 0 : i32
    %c0_i32_1 = arith.constant 0 : i32
    return %c0_i32, %c0_i32_0 : i32, i32
  }
  func.func @transform_5(%arg0: i32) -> (i32, i32) {
    %c0_i32 = arith.constant 0 : i32
    %c0_i32_0 = arith.constant 0 : i32
    %c0_i32_1 = arith.constant 0 : i32
    return %c0_i32, %c0_i32_0 : i32, i32
  }
  func.func @transform_6(%arg0: i32) -> (i32, i32) {
    %c0_i32 = arith.constant 0 : i32
    %c0_i32_0 = arith.constant 0 : i32
    %c0_i32_1 = arith.constant 0 : i32
    return %c0_i32, %c0_i32_0 : i32, i32
  }
  func.func @transform_7(%arg0: i32) -> (i32, i32) {
    %c0_i32 = arith.constant 0 : i32
    %c0_i32_0 = arith.constant 0 : i32
    return %arg0, %c0_i32 : i32, i32
  }
}

</mosaic_0001>

<llo_original>
// kernel: attention_pool2d.1
$region0: #{attention_pool2d.1}
  #allocation0 [shape = 'u32[]', space=smem, size = 0x4, offset = 0x4, fixed_abs, tag = 'smem constant byte address 0x4 - core index']
  #allocation1 [shape = 'u32[144,128]{1,0:T(1,128)}', space=vmem, size = 0x12000, scoped, tag = 'internal scratch']
  %s0 = inlined_call_operand.vmem [shape: f32[16,64,128], index: 0, kind: input, shape index: {}]
  %s1 = inlined_call_operand.vmem [shape: f32[1,1,128], index: 1, kind: input, shape index: {}]
  %s2 = inlined_call_operand.vmem [shape: f32[1,1,128], index: 2, kind: input, shape index: {}]
  %s3 = inlined_call_operand.vmem [shape: f32[1,1,128], index: 3, kind: input, shape index: {}]
  %s4 = inlined_call_operand.vmem [shape: f32[128,128], index: 4, kind: input, shape index: {}]
  %s5 = inlined_call_operand.vmem [shape: f32[128,128], index: 5, kind: input, shape index: {}]
  %s6 = inlined_call_operand.vmem [shape: f32[1,128], index: 6, kind: input, shape index: {}]
  %s7 = inlined_call_operand.hbm [shape: f32[16,128], index: 7, kind: output, shape index: {}]
  %s8 = sld [smem:[#allocation0]]
  $region61: #{attention_pool2d.1} parent=0
    _
  %s10 = ssub.s32 1, %s8
  %s11 = scalar_select 0, %s10, %s8
  $region1: #{attention_pool2d.1} parent=0
    #allocation2 [shape = 'u8[8192]{0}', space=vmem, size = 0x2000, scoped, tag = 'output window, operand 0']
    #allocation3 [shape = 's32[2]{0}', space=sflag, size = 0x8, scoped, tag = 'scoped memory for attention_pool2d.1']
    %12 = vsyncpa [#allocation3], 0
    %s13 = scalar_lea.sflag [#allocation3], 1
    %14 = vsyncpa %s13, 0
    loop: start=0, step=1, limit=4
    $region2: #{attention_pool2d.1} parent=1 // loop_pre_header
      _
    $region3: #{attention_pool2d.1} parent=1 // loop_header
      %s16 = sphi 0, %s20
      %p17 = scmp.ge.s32.totalorder %s16, 4
      %s26 = sphi 0, %s28
      %s29 = sphi 0, %s26
      %s30 = sphi 0, %s29
      %s46 = sphi 0, %s30
      %s50 = sphi 0, %s50
      %s52 = sphi 0, %s50
      %s53 = sphi 0, %s52
      %s67 = sphi 0, %s53
      %s71 = sphi 0, %s71
      %s73 = sphi 0, %s71
      %s74 = sphi 0, %s73
      %s88 = sphi 0, %s74
      %s92 = sphi 0, %s92
      %s94 = sphi 0, %s92
      %s95 = sphi 0, %s94
      %s109 = sphi 0, %s95
      %s113 = sphi 0, %s113
      %s115 = sphi 0, %s113
      %s116 = sphi 0, %s115
      %s130 = sphi 0, %s116
      %s134 = sphi 0, %s134
      %s136 = sphi 0, %s134
      %s137 = sphi 0, %s136
      %s151 = sphi 0, %s137
      %s155 = sphi 0, %s155
      %s157 = sphi 0, %s155
      %s158 = sphi 0, %s157
      %s172 = sphi 0, %s158
      %s178 = sphi 0, %s180
      %s181 = sphi 0, %s178
      %s182 = sphi 0, %s181
      %s198 = sphi 0, %s182
    $region4: #{attention_pool2d.1} parent=1 // loop_header_branch
      %19 = sbr.rel (%p17) target = $region8
    $region5: #{attention_pool2d.1} parent=1 // loop_body
      %s21 = ssub.s32 %s16, 1
      %s22 = ssub.s32 %s16, 2
      %s23 = sadd.s32 %s16, 1
      %s24 = ssub.s32 %s16, %s23
      %p25 = scmp.eq.s32.totalorder %s24, 0
      %s27 = sadd.s32 %s26, 1
      %s28 = scalar_select %p25, %s26, %s27
      %p31 = pneg %p25
      %p32 = scmp.eq.s32.totalorder %s16, 1
      %p33 = por %p31, %p32
      %p34 = scmp.ne.s32.totalorder %s26, %s29
      %p35 = scmp.eq.s32.totalorder %s16, 0
      %p36 = por %p34, %p35
      %p37 = scmp.ne.s32.totalorder %s26, %s29
      %p38 = scmp.eq.s32.totalorder %s21, 1
      %p39 = por %p37, %p38
      %p40 = scmp.ne.s32.totalorder %s29, %s30
      %p41 = scmp.eq.s32.totalorder %s21, 0
      %p42 = por %p40, %p41
      %p43 = scmp.ne.s32.totalorder %s29, %s30
      %p44 = scmp.eq.s32.totalorder %s22, 1
      %p45 = por %p43, %p44
      %p47 = scmp.ne.s32.totalorder %s30, %s46
      %p48 = scmp.eq.s32.totalorder %s22, 0
      %p49 = por %p47, %p48
      %s51 = sadd.s32 %s50, 1
      %p54 = scmp.eq.s32.totalorder %s16, 1
      %p55 = scmp.ne.s32.totalorder %s50, %s52
      %p56 = scmp.eq.s32.totalorder %s16, 0
      %p57 = por %p55, %p56
      %p58 = scmp.ne.s32.totalorder %s50, %s52
      %p59 = scmp.eq.s32.totalorder %s21, 1
      %p60 = por %p58, %p59
      %p61 = scmp.ne.s32.totalorder %s52, %s53
      %p62 = scmp.eq.s32.totalorder %s21, 0
      %p63 = por %p61, %p62
      %p64 = scmp.ne.s32.totalorder %s52, %s53
      %p65 = scmp.eq.s32.totalorder %s22, 1
      %p66 = por %p64, %p65
      %p68 = scmp.ne.s32.totalorder %s53, %s67
      %p69 = scmp.eq.s32.totalorder %s22, 0
      %p70 = por %p68, %p69
      %s72 = sadd.s32 %s71, 1
      %p75 = scmp.eq.s32.totalorder %s16, 1
      %p76 = scmp.ne.s32.totalorder %s71, %s73
      %p77 = scmp.eq.s32.totalorder %s16, 0
      %p78 = por %p76, %p77
      %p79 = scmp.ne.s32.totalorder %s71, %s73
      %p80 = scmp.eq.s32.totalorder %s21, 1
      %p81 = por %p79, %p80
      %p82 = scmp.ne.s32.totalorder %s73, %s74
      %p83 = scmp.eq.s32.totalorder %s21, 0
      %p84 = por %p82, %p83
      %p85 = scmp.ne.s32.totalorder %s73, %s74
      %p86 = scmp.eq.s32.totalorder %s22, 1
      %p87 = por %p85, %p86
      %p89 = scmp.ne.s32.totalorder %s74, %s88
      %p90 = scmp.eq.s32.totalorder %s22, 0
      %p91 = por %p89, %p90
      %s93 = sadd.s32 %s92, 1
      %p96 = scmp.eq.s32.totalorder %s16, 1
      %p97 = scmp.ne.s32.totalorder %s92, %s94
      %p98 = scmp.eq.s32.totalorder %s16, 0
      %p99 = por %p97, %p98
      %p100 = scmp.ne.s32.totalorder %s92, %s94
      %p101 = scmp.eq.s32.totalorder %s21, 1
      %p102 = por %p100, %p101
      %p103 = scmp.ne.s32.totalorder %s94, %s95
      %p104 = scmp.eq.s32.totalorder %s21, 0
      %p105 = por %p103, %p104
      %p106 = scmp.ne.s32.totalorder %s94, %s95
      %p107 = scmp.eq.s32.totalorder %s22, 1
      %p108 = por %p106, %p107
      %p110 = scmp.ne.s32.totalorder %s95, %s109
      %p111 = scmp.eq.s32.totalorder %s22, 0
      %p112 = por %p110, %p111
      %s114 = sadd.s32 %s113, 1
      %p117 = scmp.eq.s32.totalorder %s16, 1
      %p118 = scmp.ne.s32.totalorder %s113, %s115
      %p119 = scmp.eq.s32.totalorder %s16, 0
      %p120 = por %p118, %p119
      %p121 = scmp.ne.s32.totalorder %s113, %s115
      %p122 = scmp.eq.s32.totalorder %s21, 1
      %p123 = por %p121, %p122
      %p124 = scmp.ne.s32.totalorder %s115, %s116
      %p125 = scmp.eq.s32.totalorder %s21, 0
      %p126 = por %p124, %p125
      %p127 = scmp.ne.s32.totalorder %s115, %s116
      %p128 = scmp.eq.s32.totalorder %s22, 1
      %p129 = por %p127, %p128
      %p131 = scmp.ne.s32.totalorder %s116, %s130
      %p132 = scmp.eq.s32.totalorder %s22, 0
      %p133 = por %p131, %p132
      %s135 = sadd.s32 %s134, 1
      %p138 = scmp.eq.s32.totalorder %s16, 1
      %p139 = scmp.ne.s32.totalorder %s134, %s136
      %p140 = scmp.eq.s32.totalorder %s16, 0
      %p141 = por %p139, %p140
      %p142 = scmp.ne.s32.totalorder %s134, %s136
      %p143 = scmp.eq.s32.totalorder %s21, 1
      %p144 = por %p142, %p143
      %p145 = scmp.ne.s32.totalorder %s136, %s137
      %p146 = scmp.eq.s32.totalorder %s21, 0
      %p147 = por %p145, %p146
      %p148 = scmp.ne.s32.totalorder %s136, %s137
      %p149 = scmp.eq.s32.totalorder %s22, 1
      %p150 = por %p148, %p149
      %p152 = scmp.ne.s32.totalorder %s137, %s151
      %p153 = scmp.eq.s32.totalorder %s22, 0
      %p154 = por %p152, %p153
      %s156 = sadd.s32 %s155, 1
      %p159 = scmp.eq.s32.totalorder %s16, 1
      %p160 = scmp.ne.s32.totalorder %s155, %s157
      %p161 = scmp.eq.s32.totalorder %s16, 0
      %p162 = por %p160, %p161
      %p163 = scmp.ne.s32.totalorder %s155, %s157
      %p164 = scmp.eq.s32.totalorder %s21, 1
      %p165 = por %p163, %p164
      %p166 = scmp.ne.s32.totalorder %s157, %s158
      %p167 = scmp.eq.s32.totalorder %s21, 0
      %p168 = por %p166, %p167
      %p169 = scmp.ne.s32.totalorder %s157, %s158
      %p170 = scmp.eq.s32.totalorder %s22, 1
      %p171 = por %p169, %p170
      %p173 = scmp.ne.s32.totalorder %s158, %s172
      %p174 = scmp.eq.s32.totalorder %s22, 0
      %p175 = por %p173, %p174
      %s176 = ssub.s32 %s16, %s23
      %p177 = scmp.eq.s32.totalorder %s176, 0
      %s179 = sadd.s32 %s178, 1
      %s180 = scalar_select %p177, %s178, %s179
      %p183 = pneg %p177
      %p184 = scmp.eq.s32.totalorder %s16, 1
      %p185 = por %p183, %p184
      %p186 = scmp.ne.s32.totalorder %s178, %s181
      %p187 = scmp.eq.s32.totalorder %s16, 0
      %p188 = por %p186, %p187
      %p189 = scmp.ne.s32.totalorder %s178, %s181
      %p190 = scmp.eq.s32.totalorder %s21, 1
      %p191 = por %p189, %p190
      %p192 = scmp.ne.s32.totalorder %s181, %s182
      %p193 = scmp.eq.s32.totalorder %s21, 0
      %p194 = por %p192, %p193
      %p195 = scmp.ne.s32.totalorder %s181, %s182
      %p196 = scmp.eq.s32.totalorder %s22, 1
      %p197 = por %p195, %p196
      %p199 = scmp.ne.s32.totalorder %s182, %s198
      %p200 = scmp.eq.s32.totalorder %s22, 0
      %p201 = por %p199, %p200
      %p202 = scmp.le.s32.totalorder 1, %s16
      %p203 = scmp.lt.s32.totalorder %s16, 3
      %p204 = pnand %p202, %p203
      %p205 = pneg %p204
      // Predicated region
      $region9: #{attention_pool2d.1} parent=5 // pred_check
        _
      $region10: #{attention_pool2d.1} parent=5 // pred_check_branch
        %207 = sbr.rel (%p204) target = $region12
      $region11: #{attention_pool2d.1} parent=5 // pred_region
        %s208 = ssub.s32 %s16, 1
        // Predicated region
        $region13: #{attention_pool2d.1} parent=11 // pred_check
          %p209 = pneg %p63
        $region14: #{attention_pool2d.1} parent=11 // pred_check_branch
          %211 = sbr.rel (%p209) target = $region16
        $region15: #{attention_pool2d.1} parent=11 // pred_region
          _
        $region16: #{attention_pool2d.1} parent=11 // pred_fallthru
          _
        // Predicated region
        $region17: #{attention_pool2d.1} parent=11 // pred_check
          %p212 = pneg %p84
        $region18: #{attention_pool2d.1} parent=11 // pred_check_branch
          %214 = sbr.rel (%p212) target = $region20
        $region19: #{attention_pool2d.1} parent=11 // pred_region
          _
        $region20: #{attention_pool2d.1} parent=11 // pred_fallthru
          _
        // Predicated region
        $region21: #{attention_pool2d.1} parent=11 // pred_check
          %p215 = pneg %p105
        $region22: #{attention_pool2d.1} parent=11 // pred_check_branch
          %217 = sbr.rel (%p215) target = $region24
        $region23: #{attention_pool2d.1} parent=11 // pred_region
          _
        $region24: #{attention_pool2d.1} parent=11 // pred_fallthru
          _
        // Predicated region
        $region25: #{attention_pool2d.1} parent=11 // pred_check
          %p218 = pneg %p126
        $region26: #{attention_pool2d.1} parent=11 // pred_check_branch
          %220 = sbr.rel (%p218) target = $region28
        $region27: #{attention_pool2d.1} parent=11 // pred_region
          _
        $region28: #{attention_pool2d.1} parent=11 // pred_fallthru
          _
        // Predicated region
        $region29: #{attention_pool2d.1} parent=11 // pred_check
          %p221 = pneg %p147
        $region30: #{attention_pool2d.1} parent=11 // pred_check_branch
          %223 = sbr.rel (%p221) target = $region32
        $region31: #{attention_pool2d.1} parent=11 // pred_region
          _
        $region32: #{attention_pool2d.1} parent=11 // pred_fallthru
          _
        // Predicated region
        $region33: #{attention_pool2d.1} parent=11 // pred_check
          %p224 = pneg %p168
        $region34: #{attention_pool2d.1} parent=11 // pred_check_branch
          %226 = sbr.rel (%p224) target = $region36
        $region35: #{attention_pool2d.1} parent=11 // pred_region
          _
        $region36: #{attention_pool2d.1} parent=11 // pred_fallthru
          _
      $region12: #{attention_pool2d.1} parent=5 // pred_fallthru
        _
      %p227 = scmp.lt.s32.totalorder %s16, 2
      // Predicated region
      $region37: #{attention_pool2d.1} parent=5 // pred_check
        %p228 = pneg %p227
      $region38: #{attention_pool2d.1} parent=5 // pred_check_branch
        %230 = sbr.rel (%p228) target = $region40
      $region39: #{attention_pool2d.1} parent=5 // pred_region
        // Predicated region
        $region41: #{attention_pool2d.1} parent=39 // pred_check
          %p231 = pneg %p36
        $region42: #{attention_pool2d.1} parent=39 // pred_check_branch
          %233 = sbr.rel (%p231) target = $region44
        $region43: #{attention_pool2d.1} parent=39 // pred_region
          %s234 = smul.u32 8, %s16
          %p235 = scmp.lt.s32.totalorder %s234, 15
          %s236 = scalar_select %p235, %s234, 15
          %s237 = smul.addr %s236, 8
          %s238 = smul.addr %s237, 8
          %s239 = scalar_lea.vmem %s0, %s238
          %s240 = smul.u32 8, %s16
        $region44: #{attention_pool2d.1} parent=39 // pred_fallthru
          _
      $region40: #{attention_pool2d.1} parent=5 // pred_fallthru
        _
      %p241 = scmp.le.s32.totalorder 1, %s16
      %p242 = scmp.lt.s32.totalorder %s16, 3
      %p243 = pnand %p241, %p242
      %p244 = pneg %p243
      // Predicated region
      $region45: #{attention_pool2d.1} parent=5 // pred_check
        _
      $region46: #{attention_pool2d.1} parent=5 // pred_check_branch
        %246 = sbr.rel (%p243) target = $region48
      $region47: #{attention_pool2d.1} parent=5 // pred_region
        %s247 = ssub.s32 %s16, 1
        %s248 = smul.u32 8, %s21
        %p249 = scmp.lt.s32.totalorder %s248, 15
        %s250 = scalar_select %p249, %s248, 15
        %s251 = smul.addr %s250, 8
        %s252 = smul.addr %s251, 8
        %s253 = scalar_lea.vmem %s0, %s252
        %p254 = pneg %p42
        %p255 = pneg %p39
        %p256 = pneg %p63
        %p257 = pneg %p60
        %p258 = pneg %p84
        %p259 = pneg %p81
        %p260 = pneg %p105
        %p261 = pneg %p102
        %p262 = pneg %p126
        %p263 = pneg %p123
        %p264 = pneg %p147
        %p265 = pneg %p144
        %p266 = pneg %p168
        %p267 = pneg %p165
        %p268 = pneg %p194
        %p269 = pneg %p191
        %s270 = sand.u32 %s181, 1
        %s271 = scalar_lea.sflag [#allocation3], %s270
        %s272 = sand.u32 %s181, 1
        %s273 = smul.addr %s272, 8
        %s274 = scalar_lea.vmem [#allocation2], %s273
        %s275 = smul.u32 8, %s21
        %p276 = scmp.lt.s32.totalorder %s275, 15
        %s277 = scalar_select %p276, %s275, 15
        %s278 = smul.addr %s277, 8
        %s279 = smul.addr %s278, 8
        %s280 = scalar_lea.vmem %s0, %s279
        %s281 = smul.u32 8, %s21
        %v282 = vld [vmem:[%s280] sm:$0xff]
        %v283 = vld [vmem:[%s280 + $0x8] sm:$0xff]
        %v284 = vld [vmem:[%s280 + $0x10] sm:$0xff]
        %v285 = vld [vmem:[%s280 + $0x18] sm:$0xff]
        %v286 = vld [vmem:[%s280 + $0x20] sm:$0xff]
        %v287 = vld [vmem:[%s280 + $0x28] sm:$0xff]
        %v288 = vld [vmem:[%s280 + $0x30] sm:$0xff]
        %v289 = vld [vmem:[%s280 + $0x38] sm:$0xff]
        %v290 = vld [vmem:[%s280 + $0x40] sm:$0xff]
        %v291 = vld [vmem:[%s280 + $0x48] sm:$0xff]
        %v292 = vld [vmem:[%s280 + $0x50] sm:$0xff]
        %v293 = vld [vmem:[%s280 + $0x58] sm:$0xff]
        %v294 = vld [vmem:[%s280 + $0x60] sm:$0xff]
        %v295 = vld [vmem:[%s280 + $0x68] sm:$0xff]
        %v296 = vld [vmem:[%s280 + $0x70] sm:$0xff]
        %v297 = vld [vmem:[%s280 + $0x78] sm:$0xff]
        %v298 = vld [vmem:[%s280 + $0x80] sm:$0xff]
        %v299 = vld [vmem:[%s280 + $0x88] sm:$0xff]
        %v300 = vld [vmem:[%s280 + $0x90] sm:$0xff]
        %v301 = vld [vmem:[%s280 + $0x98] sm:$0xff]
        %v302 = vld [vmem:[%s280 + $0xa0] sm:$0xff]
        %v303 = vld [vmem:[%s280 + $0xa8] sm:$0xff]
        %v304 = vld [vmem:[%s280 + $0xb0] sm:$0xff]
        %v305 = vld [vmem:[%s280 + $0xb8] sm:$0xff]
        %v306 = vld [vmem:[%s280 + $0xc0] sm:$0xff]
        %v307 = vld [vmem:[%s280 + $0xc8] sm:$0xff]
        %v308 = vld [vmem:[%s280 + $0xd0] sm:$0xff]
        %v309 = vld [vmem:[%s280 + $0xd8] sm:$0xff]
        %v310 = vld [vmem:[%s280 + $0xe0] sm:$0xff]
        %v311 = vld [vmem:[%s280 + $0xe8] sm:$0xff]
        %v312 = vld [vmem:[%s280 + $0xf0] sm:$0xff]
        %v313 = vld [vmem:[%s280 + $0xf8] sm:$0xff]
        %v314 = vld [vmem:[%s280 + $0x100] sm:$0xff]
        %v315 = vld [vmem:[%s280 + $0x108] sm:$0xff]
        %v316 = vld [vmem:[%s280 + $0x110] sm:$0xff]
        %v317 = vld [vmem:[%s280 + $0x118] sm:$0xff]
        %v318 = vld [vmem:[%s280 + $0x120] sm:$0xff]
        %v319 = vld [vmem:[%s280 + $0x128] sm:$0xff]
        %v320 = vld [vmem:[%s280 + $0x130] sm:$0xff]
        %v321 = vld [vmem:[%s280 + $0x138] sm:$0xff]
        %v322 = vld [vmem:[%s280 + $0x140] sm:$0xff]
        %v323 = vld [vmem:[%s280 + $0x148] sm:$0xff]
        %v324 = vld [vmem:[%s280 + $0x150] sm:$0xff]
        %v325 = vld [vmem:[%s280 + $0x158] sm:$0xff]
        %v326 = vld [vmem:[%s280 + $0x160] sm:$0xff]
        %v327 = vld [vmem:[%s280 + $0x168] sm:$0xff]
        %v328 = vld [vmem:[%s280 + $0x170] sm:$0xff]
        %v329 = vld [vmem:[%s280 + $0x178] sm:$0xff]
        %v330 = vld [vmem:[%s280 + $0x180] sm:$0xff]
        %v331 = vld [vmem:[%s280 + $0x188] sm:$0xff]
        %v332 = vld [vmem:[%s280 + $0x190] sm:$0xff]
        %v333 = vld [vmem:[%s280 + $0x198] sm:$0xff]
        %v334 = vld [vmem:[%s280 + $0x1a0] sm:$0xff]
        %v335 = vld [vmem:[%s280 + $0x1a8] sm:$0xff]
        %v336 = vld [vmem:[%s280 + $0x1b0] sm:$0xff]
        %v337 = vld [vmem:[%s280 + $0x1b8] sm:$0xff]
        %v338 = vld [vmem:[%s280 + $0x1c0] sm:$0xff]
        %v339 = vld [vmem:[%s280 + $0x1c8] sm:$0xff]
        %v340 = vld [vmem:[%s280 + $0x1d0] sm:$0xff]
        %v341 = vld [vmem:[%s280 + $0x1d8] sm:$0xff]
        %v342 = vld [vmem:[%s280 + $0x1e0] sm:$0xff]
        %v343 = vld [vmem:[%s280 + $0x1e8] sm:$0xff]
        %v344 = vld [vmem:[%s280 + $0x1f0] sm:$0xff]
        %v345 = vld [vmem:[%s280 + $0x1f8] sm:$0xff]
        %346 = vadd.xlane.f32.xlu0 %v282
        %v347 = vpop.xlane.xlu0 %346
        %348 = vadd.xlane.f32.xlu0 %v283
        %v349 = vpop.xlane.xlu0 %348
        %350 = vadd.xlane.f32.xlu0 %v284
        %v351 = vpop.xlane.xlu0 %350
        %352 = vadd.xlane.f32.xlu0 %v285
        %v353 = vpop.xlane.xlu0 %352
        %354 = vadd.xlane.f32.xlu0 %v286
        %v355 = vpop.xlane.xlu0 %354
        %356 = vadd.xlane.f32.xlu0 %v287
        %v357 = vpop.xlane.xlu0 %356
        %358 = vadd.xlane.f32.xlu0 %v288
        %v359 = vpop.xlane.xlu0 %358
        %360 = vadd.xlane.f32.xlu0 %v289
        %v361 = vpop.xlane.xlu0 %360
        %362 = vadd.xlane.f32.xlu0 %v290
        %v363 = vpop.xlane.xlu0 %362
        %364 = vadd.xlane.f32.xlu0 %v291
        %v365 = vpop.xlane.xlu0 %364
        %366 = vadd.xlane.f32.xlu0 %v292
        %v367 = vpop.xlane.xlu0 %366
        %368 = vadd.xlane.f32.xlu0 %v293
        %v369 = vpop.xlane.xlu0 %368
        %370 = vadd.xlane.f32.xlu0 %v294
        %v371 = vpop.xlane.xlu0 %370
        %372 = vadd.xlane.f32.xlu0 %v295
        %v373 = vpop.xlane.xlu0 %372
        %374 = vadd.xlane.f32.xlu0 %v296
        %v375 = vpop.xlane.xlu0 %374
        %376 = vadd.xlane.f32.xlu0 %v297
        %v377 = vpop.xlane.xlu0 %376
        %378 = vadd.xlane.f32.xlu0 %v298
        %v379 = vpop.xlane.xlu0 %378
        %380 = vadd.xlane.f32.xlu0 %v299
        %v381 = vpop.xlane.xlu0 %380
        %382 = vadd.xlane.f32.xlu0 %v300
        %v383 = vpop.xlane.xlu0 %382
        %384 = vadd.xlane.f32.xlu0 %v301
        %v385 = vpop.xlane.xlu0 %384
        %386 = vadd.xlane.f32.xlu0 %v302
        %v387 = vpop.xlane.xlu0 %386
        %388 = vadd.xlane.f32.xlu0 %v303
        %v389 = vpop.xlane.xlu0 %388
        %390 = vadd.xlane.f32.xlu0 %v304
        %v391 = vpop.xlane.xlu0 %390
        %392 = vadd.xlane.f32.xlu0 %v305
        %v393 = vpop.xlane.xlu0 %392
        %394 = vadd.xlane.f32.xlu0 %v306
        %v395 = vpop.xlane.xlu0 %394
        %396 = vadd.xlane.f32.xlu0 %v307
        %v397 = vpop.xlane.xlu0 %396
        %398 = vadd.xlane.f32.xlu0 %v308
        %v399 = vpop.xlane.xlu0 %398
        %400 = vadd.xlane.f32.xlu0 %v309
        %v401 = vpop.xlane.xlu0 %400
        %402 = vadd.xlane.f32.xlu0 %v310
        %v403 = vpop.xlane.xlu0 %402
        %404 = vadd.xlane.f32.xlu0 %v311
        %v405 = vpop.xlane.xlu0 %404
        %406 = vadd.xlane.f32.xlu0 %v312
        %v407 = vpop.xlane.xlu0 %406
        %408 = vadd.xlane.f32.xlu0 %v313
        %v409 = vpop.xlane.xlu0 %408
        %410 = vadd.xlane.f32.xlu0 %v314
        %v411 = vpop.xlane.xlu0 %410
        %412 = vadd.xlane.f32.xlu0 %v315
        %v413 = vpop.xlane.xlu0 %412
        %414 = vadd.xlane.f32.xlu0 %v316
        %v415 = vpop.xlane.xlu0 %414
        %416 = vadd.xlane.f32.xlu0 %v317
        %v417 = vpop.xlane.xlu0 %416
        %418 = vadd.xlane.f32.xlu0 %v318
        %v419 = vpop.xlane.xlu0 %418
        %420 = vadd.xlane.f32.xlu0 %v319
        %v421 = vpop.xlane.xlu0 %420
        %422 = vadd.xlane.f32.xlu0 %v320
        %v423 = vpop.xlane.xlu0 %422
        %424 = vadd.xlane.f32.xlu0 %v321
        %v425 = vpop.xlane.xlu0 %424
        %426 = vadd.xlane.f32.xlu0 %v322
        %v427 = vpop.xlane.xlu0 %426
        %428 = vadd.xlane.f32.xlu0 %v323
        %v429 = vpop.xlane.xlu0 %428
        %430 = vadd.xlane.f32.xlu0 %v324
        %v431 = vpop.xlane.xlu0 %430
        %432 = vadd.xlane.f32.xlu0 %v325
        %v433 = vpop.xlane.xlu0 %432
        %434 = vadd.xlane.f32.xlu0 %v326
        %v435 = vpop.xlane.xlu0 %434
        %436 = vadd.xlane.f32.xlu0 %v327
        %v437 = vpop.xlane.xlu0 %436
        %438 = vadd.xlane.f32.xlu0 %v328
        %v439 = vpop.xlane.xlu0 %438
        %440 = vadd.xlane.f32.xlu0 %v329
        %v441 = vpop.xlane.xlu0 %440
        %442 = vadd.xlane.f32.xlu0 %v330
        %v443 = vpop.xlane.xlu0 %442
        %444 = vadd.xlane.f32.xlu0 %v331
        %v445 = vpop.xlane.xlu0 %444
        %446 = vadd.xlane.f32.xlu0 %v332
        %v447 = vpop.xlane.xlu0 %446
        %448 = vadd.xlane.f32.xlu0 %v333
        %v449 = vpop.xlane.xlu0 %448
        %450 = vadd.xlane.f32.xlu0 %v334
        %v451 = vpop.xlane.xlu0 %450
        %452 = vadd.xlane.f32.xlu0 %v335
        %v453 = vpop.xlane.xlu0 %452
        %454 = vadd.xlane.f32.xlu0 %v336
        %v455 = vpop.xlane.xlu0 %454
        %456 = vadd.xlane.f32.xlu0 %v337
        %v457 = vpop.xlane.xlu0 %456
        %458 = vadd.xlane.f32.xlu0 %v338
        %v459 = vpop.xlane.xlu0 %458
        %460 = vadd.xlane.f32.xlu0 %v339
        %v461 = vpop.xlane.xlu0 %460
        %462 = vadd.xlane.f32.xlu0 %v340
        %v463 = vpop.xlane.xlu0 %462
        %464 = vadd.xlane.f32.xlu0 %v341
        %v465 = vpop.xlane.xlu0 %464
        %466 = vadd.xlane.f32.xlu0 %v342
        %v467 = vpop.xlane.xlu0 %466
        %468 = vadd.xlane.f32.xlu0 %v343
        %v469 = vpop.xlane.xlu0 %468
        %470 = vadd.xlane.f32.xlu0 %v344
        %v471 = vpop.xlane.xlu0 %470
        %472 = vadd.xlane.f32.xlu0 %v345
        %v473 = vpop.xlane.xlu0 %472
        %v474 = vrcp.pop 128.0
        %v475 = vmul.f32 %v347, %v474
        %v476 = vmul.f32 %v349, %v474
        %v477 = vmul.f32 %v351, %v474
        %v478 = vmul.f32 %v353, %v474
        %v479 = vmul.f32 %v355, %v474
        %v480 = vmul.f32 %v357, %v474
        %v481 = vmul.f32 %v359, %v474
        %v482 = vmul.f32 %v361, %v474
        %v483 = vmul.f32 %v363, %v474
        %v484 = vmul.f32 %v365, %v474
        %v485 = vmul.f32 %v367, %v474
        %v486 = vmul.f32 %v369, %v474
        %v487 = vmul.f32 %v371, %v474
        %v488 = vmul.f32 %v373, %v474
        %v489 = vmul.f32 %v375, %v474
        %v490 = vmul.f32 %v377, %v474
        %v491 = vmul.f32 %v379, %v474
        %v492 = vmul.f32 %v381, %v474
        %v493 = vmul.f32 %v383, %v474
        %v494 = vmul.f32 %v385, %v474
        %v495 = vmul.f32 %v387, %v474
        %v496 = vmul.f32 %v389, %v474
        %v497 = vmul.f32 %v391, %v474
        %v498 = vmul.f32 %v393, %v474
        %v499 = vmul.f32 %v395, %v474
        %v500 = vmul.f32 %v397, %v474
        %v501 = vmul.f32 %v399, %v474
        %v502 = vmul.f32 %v401, %v474
        %v503 = vmul.f32 %v403, %v474
        %v504 = vmul.f32 %v405, %v474
        %v505 = vmul.f32 %v407, %v474
        %v506 = vmul.f32 %v409, %v474
        %v507 = vmul.f32 %v411, %v474
        %v508 = vmul.f32 %v413, %v474
        %v509 = vmul.f32 %v415, %v474
        %v510 = vmul.f32 %v417, %v474
        %v511 = vmul.f32 %v419, %v474
        %v512 = vmul.f32 %v421, %v474
        %v513 = vmul.f32 %v423, %v474
        %v514 = vmul.f32 %v425, %v474
        %v515 = vmul.f32 %v427, %v474
        %v516 = vmul.f32 %v429, %v474
        %v517 = vmul.f32 %v431, %v474
        %v518 = vmul.f32 %v433, %v474
        %v519 = vmul.f32 %v435, %v474
        %v520 = vmul.f32 %v437, %v474
        %v521 = vmul.f32 %v439, %v474
        %v522 = vmul.f32 %v441, %v474
        %v523 = vmul.f32 %v443, %v474
        %v524 = vmul.f32 %v445, %v474
        %v525 = vmul.f32 %v447, %v474
        %v526 = vmul.f32 %v449, %v474
        %v527 = vmul.f32 %v451, %v474
        %v528 = vmul.f32 %v453, %v474
        %v529 = vmul.f32 %v455, %v474
        %v530 = vmul.f32 %v457, %v474
        %v531 = vmul.f32 %v459, %v474
        %v532 = vmul.f32 %v461, %v474
        %v533 = vmul.f32 %v463, %v474
        %v534 = vmul.f32 %v465, %v474
        %v535 = vmul.f32 %v467, %v474
        %v536 = vmul.f32 %v469, %v474
        %v537 = vmul.f32 %v471, %v474
        %v538 = vmul.f32 %v473, %v474
        %v539 = vsub.f32 %v282, %v475
        %v540 = vsub.f32 %v283, %v476
        %v541 = vsub.f32 %v284, %v477
        %v542 = vsub.f32 %v285, %v478
        %v543 = vsub.f32 %v286, %v479
        %v544 = vsub.f32 %v287, %v480
        %v545 = vsub.f32 %v288, %v481
        %v546 = vsub.f32 %v289, %v482
        %v547 = vsub.f32 %v290, %v483
        %v548 = vsub.f32 %v291, %v484
        %v549 = vsub.f32 %v292, %v485
        %v550 = vsub.f32 %v293, %v486
        %v551 = vsub.f32 %v294, %v487
        %v552 = vsub.f32 %v295, %v488
        %v553 = vsub.f32 %v296, %v489
        %v554 = vsub.f32 %v297, %v490
        %v555 = vsub.f32 %v298, %v491
        %v556 = vsub.f32 %v299, %v492
        %v557 = vsub.f32 %v300, %v493
        %v558 = vsub.f32 %v301, %v494
        %v559 = vsub.f32 %v302, %v495
        %v560 = vsub.f32 %v303, %v496
        %v561 = vsub.f32 %v304, %v497
        %v562 = vsub.f32 %v305, %v498
        %v563 = vsub.f32 %v306, %v499
        %v564 = vsub.f32 %v307, %v500
        %v565 = vsub.f32 %v308, %v501
        %v566 = vsub.f32 %v309, %v502
        %v567 = vsub.f32 %v310, %v503
        %v568 = vsub.f32 %v311, %v504
        %v569 = vsub.f32 %v312, %v505
        %v570 = vsub.f32 %v313, %v506
        %v571 = vsub.f32 %v314, %v507
        %v572 = vsub.f32 %v315, %v508
        %v573 = vsub.f32 %v316, %v509
        %v574 = vsub.f32 %v317, %v510
        %v575 = vsub.f32 %v318, %v511
        %v576 = vsub.f32 %v319, %v512
        %v577 = vsub.f32 %v320, %v513
        %v578 = vsub.f32 %v321, %v514
        %v579 = vsub.f32 %v322, %v515
        %v580 = vsub.f32 %v323, %v516
        %v581 = vsub.f32 %v324, %v517
        %v582 = vsub.f32 %v325, %v518
        %v583 = vsub.f32 %v326, %v519
        %v584 = vsub.f32 %v327, %v520
        %v585 = vsub.f32 %v328, %v521
        %v586 = vsub.f32 %v329, %v522
        %v587 = vsub.f32 %v330, %v523
        %v588 = vsub.f32 %v331, %v524
        %v589 = vsub.f32 %v332, %v525
        %v590 = vsub.f32 %v333, %v526
        %v591 = vsub.f32 %v334, %v527
        %v592 = vsub.f32 %v335, %v528
        %v593 = vsub.f32 %v336, %v529
        %v594 = vsub.f32 %v337, %v530
        %v595 = vsub.f32 %v338, %v531
        %v596 = vsub.f32 %v339, %v532
        %v597 = vsub.f32 %v340, %v533
        %v598 = vsub.f32 %v341, %v534
        %v599 = vsub.f32 %v342, %v535
        %v600 = vsub.f32 %v343, %v536
        %v601 = vsub.f32 %v344, %v537
        %v602 = vsub.f32 %v345, %v538
        %v603 = vmul.f32 %v539, %v539
        %v604 = vmul.f32 %v540, %v540
        %v605 = vmul.f32 %v541, %v541
        %v606 = vmul.f32 %v542, %v542
        %v607 = vmul.f32 %v543, %v543
        %v608 = vmul.f32 %v544, %v544
        %v609 = vmul.f32 %v545, %v545
        %v610 = vmul.f32 %v546, %v546
        %v611 = vmul.f32 %v547, %v547
        %v612 = vmul.f32 %v548, %v548
        %v613 = vmul.f32 %v549, %v549
        %v614 = vmul.f32 %v550, %v550
        %v615 = vmul.f32 %v551, %v551
        %v616 = vmul.f32 %v552, %v552
        %v617 = vmul.f32 %v553, %v553
        %v618 = vmul.f32 %v554, %v554
        %v619 = vmul.f32 %v555, %v555
        %v620 = vmul.f32 %v556, %v556
        %v621 = vmul.f32 %v557, %v557
        %v622 = vmul.f32 %v558, %v558
        %v623 = vmul.f32 %v559, %v559
        %v624 = vmul.f32 %v560, %v560
        %v625 = vmul.f32 %v561, %v561
        %v626 = vmul.f32 %v562, %v562
        %v627 = vmul.f32 %v563, %v563
        %v628 = vmul.f32 %v564, %v564
        %v629 = vmul.f32 %v565, %v565
        %v630 = vmul.f32 %v566, %v566
        %v631 = vmul.f32 %v567, %v567
        %v632 = vmul.f32 %v568, %v568
        %v633 = vmul.f32 %v569, %v569
        %v634 = vmul.f32 %v570, %v570
        %v635 = vmul.f32 %v571, %v571
        %v636 = vmul.f32 %v572, %v572
        %v637 = vmul.f32 %v573, %v573
        %v638 = vmul.f32 %v574, %v574
        %v639 = vmul.f32 %v575, %v575
        %v640 = vmul.f32 %v576, %v576
        %v641 = vmul.f32 %v577, %v577
        %v642 = vmul.f32 %v578, %v578
        %v643 = vmul.f32 %v579, %v579
        %v644 = vmul.f32 %v580, %v580
        %v645 = vmul.f32 %v581, %v581
        %v646 = vmul.f32 %v582, %v582
        %v647 = vmul.f32 %v583, %v583
        %v648 = vmul.f32 %v584, %v584
        %v649 = vmul.f32 %v585, %v585
        %v650 = vmul.f32 %v586, %v586
        %v651 = vmul.f32 %v587, %v587
        %v652 = vmul.f32 %v588, %v588
        %v653 = vmul.f32 %v589, %v589
        %v654 = vmul.f32 %v590, %v590
        %v655 = vmul.f32 %v591, %v591
        %v656 = vmul.f32 %v592, %v592
        %v657 = vmul.f32 %v593, %v593
        %v658 = vmul.f32 %v594, %v594
        %v659 = vmul.f32 %v595, %v595
        %v660 = vmul.f32 %v596, %v596
        %v661 = vmul.f32 %v597, %v597
        %v662 = vmul.f32 %v598, %v598
        %v663 = vmul.f32 %v599, %v599
        %v664 = vmul.f32 %v600, %v600
        %v665 = vmul.f32 %v601, %v601
        %v666 = vmul.f32 %v602, %v602
        %667 = vadd.xlane.f32.xlu0 %v603
        %v668 = vpop.xlane.xlu0 %667
        %669 = vadd.xlane.f32.xlu0 %v604
        %v670 = vpop.xlane.xlu0 %669
        %671 = vadd.xlane.f32.xlu0 %v605
        %v672 = vpop.xlane.xlu0 %671
        %673 = vadd.xlane.f32.xlu0 %v606
        %v674 = vpop.xlane.xlu0 %673
        %675 = vadd.xlane.f32.xlu0 %v607
        %v676 = vpop.xlane.xlu0 %675
        %677 = vadd.xlane.f32.xlu0 %v608
        %v678 = vpop.xlane.xlu0 %677
        %679 = vadd.xlane.f32.xlu0 %v609
        %v680 = vpop.xlane.xlu0 %679
        %681 = vadd.xlane.f32.xlu0 %v610
        %v682 = vpop.xlane.xlu0 %681
        %683 = vadd.xlane.f32.xlu0 %v611
        %v684 = vpop.xlane.xlu0 %683
        %685 = vadd.xlane.f32.xlu0 %v612
        %v686 = vpop.xlane.xlu0 %685
        %687 = vadd.xlane.f32.xlu0 %v613
        %v688 = vpop.xlane.xlu0 %687
        %689 = vadd.xlane.f32.xlu0 %v614
        %v690 = vpop.xlane.xlu0 %689
        %691 = vadd.xlane.f32.xlu0 %v615
        %v692 = vpop.xlane.xlu0 %691
        %693 = vadd.xlane.f32.xlu0 %v616
        %v694 = vpop.xlane.xlu0 %693
        %695 = vadd.xlane.f32.xlu0 %v617
        %v696 = vpop.xlane.xlu0 %695
        %697 = vadd.xlane.f32.xlu0 %v618
        %v698 = vpop.xlane.xlu0 %697
        %699 = vadd.xlane.f32.xlu0 %v619
        %v700 = vpop.xlane.xlu0 %699
        %701 = vadd.xlane.f32.xlu0 %v620
        %v702 = vpop.xlane.xlu0 %701
        %703 = vadd.xlane.f32.xlu0 %v621
        %v704 = vpop.xlane.xlu0 %703
        %705 = vadd.xlane.f32.xlu0 %v622
        %v706 = vpop.xlane.xlu0 %705
        %707 = vadd.xlane.f32.xlu0 %v623
        %v708 = vpop.xlane.xlu0 %707
        %709 = vadd.xlane.f32.xlu0 %v624
        %v710 = vpop.xlane.xlu0 %709
        %711 = vadd.xlane.f32.xlu0 %v625
        %v712 = vpop.xlane.xlu0 %711
        %713 = vadd.xlane.f32.xlu0 %v626
        %v714 = vpop.xlane.xlu0 %713
        %715 = vadd.xlane.f32.xlu0 %v627
        %v716 = vpop.xlane.xlu0 %715
        %717 = vadd.xlane.f32.xlu0 %v628
        %v718 = vpop.xlane.xlu0 %717
        %719 = vadd.xlane.f32.xlu0 %v629
        %v720 = vpop.xlane.xlu0 %719
        %721 = vadd.xlane.f32.xlu0 %v630
        %v722 = vpop.xlane.xlu0 %721
        %723 = vadd.xlane.f32.xlu0 %v631
        %v724 = vpop.xlane.xlu0 %723
        %725 = vadd.xlane.f32.xlu0 %v632
        %v726 = vpop.xlane.xlu0 %725
        %727 = vadd.xlane.f32.xlu0 %v633
        %v728 = vpop.xlane.xlu0 %727
        %729 = vadd.xlane.f32.xlu0 %v634
        %v730 = vpop.xlane.xlu0 %729
        %731 = vadd.xlane.f32.xlu0 %v635
        %v732 = vpop.xlane.xlu0 %731
        %733 = vadd.xlane.f32.xlu0 %v636
        %v734 = vpop.xlane.xlu0 %733
        %735 = vadd.xlane.f32.xlu0 %v637
        %v736 = vpop.xlane.xlu0 %735
        %737 = vadd.xlane.f32.xlu0 %v638
        %v738 = vpop.xlane.xlu0 %737
        %739 = vadd.xlane.f32.xlu0 %v639
        %v740 = vpop.xlane.xlu0 %739
        %741 = vadd.xlane.f32.xlu0 %v640
        %v742 = vpop.xlane.xlu0 %741
        %743 = vadd.xlane.f32.xlu0 %v641
        %v744 = vpop.xlane.xlu0 %743
        %745 = vadd.xlane.f32.xlu0 %v642
        %v746 = vpop.xlane.xlu0 %745
        %747 = vadd.xlane.f32.xlu0 %v643
        %v748 = vpop.xlane.xlu0 %747
        %749 = vadd.xlane.f32.xlu0 %v644
        %v750 = vpop.xlane.xlu0 %749
        %751 = vadd.xlane.f32.xlu0 %v645
        %v752 = vpop.xlane.xlu0 %751
        %753 = vadd.xlane.f32.xlu0 %v646
        %v754 = vpop.xlane.xlu0 %753
        %755 = vadd.xlane.f32.xlu0 %v647
        %v756 = vpop.xlane.xlu0 %755
        %757 = vadd.xlane.f32.xlu0 %v648
        %v758 = vpop.xlane.xlu0 %757
        %759 = vadd.xlane.f32.xlu0 %v649
        %v760 = vpop.xlane.xlu0 %759
        %761 = vadd.xlane.f32.xlu0 %v650
        %v762 = vpop.xlane.xlu0 %761
        %763 = vadd.xlane.f32.xlu0 %v651
        %v764 = vpop.xlane.xlu0 %763
        %765 = vadd.xlane.f32.xlu0 %v652
        %v766 = vpop.xlane.xlu0 %765
        %767 = vadd.xlane.f32.xlu0 %v653
        %v768 = vpop.xlane.xlu0 %767
        %769 = vadd.xlane.f32.xlu0 %v654
        %v770 = vpop.xlane.xlu0 %769
        %771 = vadd.xlane.f32.xlu0 %v655
        %v772 = vpop.xlane.xlu0 %771
        %773 = vadd.xlane.f32.xlu0 %v656
        %v774 = vpop.xlane.xlu0 %773
        %775 = vadd.xlane.f32.xlu0 %v657
        %v776 = vpop.xlane.xlu0 %775
        %777 = vadd.xlane.f32.xlu0 %v658
        %v778 = vpop.xlane.xlu0 %777
        %779 = vadd.xlane.f32.xlu0 %v659
        %v780 = vpop.xlane.xlu0 %779
        %781 = vadd.xlane.f32.xlu0 %v660
        %v782 = vpop.xlane.xlu0 %781
        %783 = vadd.xlane.f32.xlu0 %v661
        %v784 = vpop.xlane.xlu0 %783
        %785 = vadd.xlane.f32.xlu0 %v662
        %v786 = vpop.xlane.xlu0 %785
        %787 = vadd.xlane.f32.xlu0 %v663
        %v788 = vpop.xlane.xlu0 %787
        %789 = vadd.xlane.f32.xlu0 %v664
        %v790 = vpop.xlane.xlu0 %789
        %791 = vadd.xlane.f32.xlu0 %v665
        %v792 = vpop.xlane.xlu0 %791
        %793 = vadd.xlane.f32.xlu0 %v666
        %v794 = vpop.xlane.xlu0 %793
        %v795 = vmul.f32 %v668, %v474
        %v796 = vmul.f32 %v670, %v474
        %v797 = vmul.f32 %v672, %v474
        %v798 = vmul.f32 %v674, %v474
        %v799 = vmul.f32 %v676, %v474
        %v800 = vmul.f32 %v678, %v474
        %v801 = vmul.f32 %v680, %v474
        %v802 = vmul.f32 %v682, %v474
        %v803 = vmul.f32 %v684, %v474
        %v804 = vmul.f32 %v686, %v474
        %v805 = vmul.f32 %v688, %v474
        %v806 = vmul.f32 %v690, %v474
        %v807 = vmul.f32 %v692, %v474
        %v808 = vmul.f32 %v694, %v474
        %v809 = vmul.f32 %v696, %v474
        %v810 = vmul.f32 %v698, %v474
        %v811 = vmul.f32 %v700, %v474
        %v812 = vmul.f32 %v702, %v474
        %v813 = vmul.f32 %v704, %v474
        %v814 = vmul.f32 %v706, %v474
        %v815 = vmul.f32 %v708, %v474
        %v816 = vmul.f32 %v710, %v474
        %v817 = vmul.f32 %v712, %v474
        %v818 = vmul.f32 %v714, %v474
        %v819 = vmul.f32 %v716, %v474
        %v820 = vmul.f32 %v718, %v474
        %v821 = vmul.f32 %v720, %v474
        %v822 = vmul.f32 %v722, %v474
        %v823 = vmul.f32 %v724, %v474
        %v824 = vmul.f32 %v726, %v474
        %v825 = vmul.f32 %v728, %v474
        %v826 = vmul.f32 %v730, %v474
        %v827 = vmul.f32 %v732, %v474
        %v828 = vmul.f32 %v734, %v474
        %v829 = vmul.f32 %v736, %v474
        %v830 = vmul.f32 %v738, %v474
        %v831 = vmul.f32 %v740, %v474
        %v832 = vmul.f32 %v742, %v474
        %v833 = vmul.f32 %v744, %v474
        %v834 = vmul.f32 %v746, %v474
        %v835 = vmul.f32 %v748, %v474
        %v836 = vmul.f32 %v750, %v474
        %v837 = vmul.f32 %v752, %v474
        %v838 = vmul.f32 %v754, %v474
        %v839 = vmul.f32 %v756, %v474
        %v840 = vmul.f32 %v758, %v474
        %v841 = vmul.f32 %v760, %v474
        %v842 = vmul.f32 %v762, %v474
        %v843 = vmul.f32 %v764, %v474
        %v844 = vmul.f32 %v766, %v474
        %v845 = vmul.f32 %v768, %v474
        %v846 = vmul.f32 %v770, %v474
        %v847 = vmul.f32 %v772, %v474
        %v848 = vmul.f32 %v774, %v474
        %v849 = vmul.f32 %v776, %v474
        %v850 = vmul.f32 %v778, %v474
        %v851 = vmul.f32 %v780, %v474
        %v852 = vmul.f32 %v782, %v474
        %v853 = vmul.f32 %v784, %v474
        %v854 = vmul.f32 %v786, %v474
        %v855 = vmul.f32 %v788, %v474
        %v856 = vmul.f32 %v790, %v474
        %v857 = vmul.f32 %v792, %v474
        %v858 = vmul.f32 %v794, %v474
        %v859 = vadd.f32 %v795, 1e-05
        %v860 = vadd.f32 %v796, 1e-05
        %v861 = vadd.f32 %v797, 1e-05
        %v862 = vadd.f32 %v798, 1e-05
        %v863 = vadd.f32 %v799, 1e-05
        %v864 = vadd.f32 %v800, 1e-05
        %v865 = vadd.f32 %v801, 1e-05
        %v866 = vadd.f32 %v802, 1e-05
        %v867 = vadd.f32 %v803, 1e-05
        %v868 = vadd.f32 %v804, 1e-05
        %v869 = vadd.f32 %v805, 1e-05
        %v870 = vadd.f32 %v806, 1e-05
        %v871 = vadd.f32 %v807, 1e-05
        %v872 = vadd.f32 %v808, 1e-05
        %v873 = vadd.f32 %v809, 1e-05
        %v874 = vadd.f32 %v810, 1e-05
        %v875 = vadd.f32 %v811, 1e-05
        %v876 = vadd.f32 %v812, 1e-05
        %v877 = vadd.f32 %v813, 1e-05
        %v878 = vadd.f32 %v814, 1e-05
        %v879 = vadd.f32 %v815, 1e-05
        %v880 = vadd.f32 %v816, 1e-05
        %v881 = vadd.f32 %v817, 1e-05
        %v882 = vadd.f32 %v818, 1e-05
        %v883 = vadd.f32 %v819, 1e-05
        %v884 = vadd.f32 %v820, 1e-05
        %v885 = vadd.f32 %v821, 1e-05
        %v886 = vadd.f32 %v822, 1e-05
        %v887 = vadd.f32 %v823, 1e-05
        %v888 = vadd.f32 %v824, 1e-05
        %v889 = vadd.f32 %v825, 1e-05
        %v890 = vadd.f32 %v826, 1e-05
        %v891 = vadd.f32 %v827, 1e-05
        %v892 = vadd.f32 %v828, 1e-05
        %v893 = vadd.f32 %v829, 1e-05
        %v894 = vadd.f32 %v830, 1e-05
        %v895 = vadd.f32 %v831, 1e-05
        %v896 = vadd.f32 %v832, 1e-05
        %v897 = vadd.f32 %v833, 1e-05
        %v898 = vadd.f32 %v834, 1e-05
        %v899 = vadd.f32 %v835, 1e-05
        %v900 = vadd.f32 %v836, 1e-05
        %v901 = vadd.f32 %v837, 1e-05
        %v902 = vadd.f32 %v838, 1e-05
        %v903 = vadd.f32 %v839, 1e-05
        %v904 = vadd.f32 %v840, 1e-05
        %v905 = vadd.f32 %v841, 1e-05
        %v906 = vadd.f32 %v842, 1e-05
        %v907 = vadd.f32 %v843, 1e-05
        %v908 = vadd.f32 %v844, 1e-05
        %v909 = vadd.f32 %v845, 1e-05
        %v910 = vadd.f32 %v846, 1e-05
        %v911 = vadd.f32 %v847, 1e-05
        %v912 = vadd.f32 %v848, 1e-05
        %v913 = vadd.f32 %v849, 1e-05
        %v914 = vadd.f32 %v850, 1e-05
        %v915 = vadd.f32 %v851, 1e-05
        %v916 = vadd.f32 %v852, 1e-05
        %v917 = vadd.f32 %v853, 1e-05
        %v918 = vadd.f32 %v854, 1e-05
        %v919 = vadd.f32 %v855, 1e-05
        %v920 = vadd.f32 %v856, 1e-05
        %v921 = vadd.f32 %v857, 1e-05
        %v922 = vadd.f32 %v858, 1e-05
        %v923 = vrsqrt.pop %v859
        %v924 = vrsqrt.pop %v860
        %v925 = vrsqrt.pop %v861
        %v926 = vrsqrt.pop %v862
        %v927 = vrsqrt.pop %v863
        %v928 = vrsqrt.pop %v864
        %v929 = vrsqrt.pop %v865
        %v930 = vrsqrt.pop %v866
        %v931 = vrsqrt.pop %v867
        %v932 = vrsqrt.pop %v868
        %v933 = vrsqrt.pop %v869
        %v934 = vrsqrt.pop %v870
        %v935 = vrsqrt.pop %v871
        %v936 = vrsqrt.pop %v872
        %v937 = vrsqrt.pop %v873
        %v938 = vrsqrt.pop %v874
        %v939 = vrsqrt.pop %v875
        %v940 = vrsqrt.pop %v876
        %v941 = vrsqrt.pop %v877
        %v942 = vrsqrt.pop %v878
        %v943 = vrsqrt.pop %v879
        %v944 = vrsqrt.pop %v880
        %v945 = vrsqrt.pop %v881
        %v946 = vrsqrt.pop %v882
        %v947 = vrsqrt.pop %v883
        %v948 = vrsqrt.pop %v884
        %v949 = vrsqrt.pop %v885
        %v950 = vrsqrt.pop %v886
        %v951 = vrsqrt.pop %v887
        %v952 = vrsqrt.pop %v888
        %v953 = vrsqrt.pop %v889
        %v954 = vrsqrt.pop %v890
        %v955 = vrsqrt.pop %v891
        %v956 = vrsqrt.pop %v892
        %v957 = vrsqrt.pop %v893
        %v958 = vrsqrt.pop %v894
        %v959 = vrsqrt.pop %v895
        %v960 = vrsqrt.pop %v896
        %v961 = vrsqrt.pop %v897
        %v962 = vrsqrt.pop %v898
        %v963 = vrsqrt.pop %v899
        %v964 = vrsqrt.pop %v900
        %v965 = vrsqrt.pop %v901
        %v966 = vrsqrt.pop %v902
        %v967 = vrsqrt.pop %v903
        %v968 = vrsqrt.pop %v904
        %v969 = vrsqrt.pop %v905
        %v970 = vrsqrt.pop %v906
        %v971 = vrsqrt.pop %v907
        %v972 = vrsqrt.pop %v908
        %v973 = vrsqrt.pop %v909
        %v974 = vrsqrt.pop %v910
        %v975 = vrsqrt.pop %v911
        %v976 = vrsqrt.pop %v912
        %v977 = vrsqrt.pop %v913
        %v978 = vrsqrt.pop %v914
        %v979 = vrsqrt.pop %v915
        %v980 = vrsqrt.pop %v916
        %v981 = vrsqrt.pop %v917
        %v982 = vrsqrt.pop %v918
        %v983 = vrsqrt.pop %v919
        %v984 = vrsqrt.pop %v920
        %v985 = vrsqrt.pop %v921
        %v986 = vrsqrt.pop %v922
        %v987 = vmul.f32 %v539, %v923
        %v988 = vmul.f32 %v540, %v924
        %v989 = vmul.f32 %v541, %v925
        %v990 = vmul.f32 %v542, %v926
        %v991 = vmul.f32 %v543, %v927
        %v992 = vmul.f32 %v544, %v928
        %v993 = vmul.f32 %v545, %v929
        %v994 = vmul.f32 %v546, %v930
        %v995 = vmul.f32 %v547, %v931
        %v996 = vmul.f32 %v548, %v932
        %v997 = vmul.f32 %v549, %v933
        %v998 = vmul.f32 %v550, %v934
        %v999 = vmul.f32 %v551, %v935
        %v1000 = vmul.f32 %v552, %v936
        %v1001 = vmul.f32 %v553, %v937
        %v1002 = vmul.f32 %v554, %v938
        %v1003 = vmul.f32 %v555, %v939
        %v1004 = vmul.f32 %v556, %v940
        %v1005 = vmul.f32 %v557, %v941
        %v1006 = vmul.f32 %v558, %v942
        %v1007 = vmul.f32 %v559, %v943
        %v1008 = vmul.f32 %v560, %v944
        %v1009 = vmul.f32 %v561, %v945
        %v1010 = vmul.f32 %v562, %v946
        %v1011 = vmul.f32 %v563, %v947
        %v1012 = vmul.f32 %v564, %v948
        %v1013 = vmul.f32 %v565, %v949
        %v1014 = vmul.f32 %v566, %v950
        %v1015 = vmul.f32 %v567, %v951
        %v1016 = vmul.f32 %v568, %v952
        %v1017 = vmul.f32 %v569, %v953
        %v1018 = vmul.f32 %v570, %v954
        %v1019 = vmul.f32 %v571, %v955
        %v1020 = vmul.f32 %v572, %v956
        %v1021 = vmul.f32 %v573, %v957
        %v1022 = vmul.f32 %v574, %v958
        %v1023 = vmul.f32 %v575, %v959
        %v1024 = vmul.f32 %v576, %v960
        %v1025 = vmul.f32 %v577, %v961
        %v1026 = vmul.f32 %v578, %v962
        %v1027 = vmul.f32 %v579, %v963
        %v1028 = vmul.f32 %v580, %v964
        %v1029 = vmul.f32 %v581, %v965
        %v1030 = vmul.f32 %v582, %v966
        %v1031 = vmul.f32 %v583, %v967
        %v1032 = vmul.f32 %v584, %v968
        %v1033 = vmul.f32 %v585, %v969
        %v1034 = vmul.f32 %v586, %v970
        %v1035 = vmul.f32 %v587, %v971
        %v1036 = vmul.f32 %v588, %v972
        %v1037 = vmul.f32 %v589, %v973
        %v1038 = vmul.f32 %v590, %v974
        %v1039 = vmul.f32 %v591, %v975
        %v1040 = vmul.f32 %v592, %v976
        %v1041 = vmul.f32 %v593, %v977
        %v1042 = vmul.f32 %v594, %v978
        %v1043 = vmul.f32 %v595, %v979
        %v1044 = vmul.f32 %v596, %v980
        %v1045 = vmul.f32 %v597, %v981
        %v1046 = vmul.f32 %v598, %v982
        %v1047 = vmul.f32 %v599, %v983
        %v1048 = vmul.f32 %v600, %v984
        %v1049 = vmul.f32 %v601, %v985
        %v1050 = vmul.f32 %v602, %v986
        %v1051 = vld [vmem:[%s1] sm:$0x1]
        %v1053 = vlaneseq
        %v1054 = vshrl.u32 %v1053, 7
        %v1055 = vsub.s32 0, %v1054
        %v1056 = vrot.slane %v1051, %v1055
        %v1058 = vmul.f32 %v987, %v1056
        %v1059 = vmul.f32 %v988, %v1056
        %v1060 = vmul.f32 %v989, %v1056
        %v1061 = vmul.f32 %v990, %v1056
        %v1062 = vmul.f32 %v991, %v1056
        %v1063 = vmul.f32 %v992, %v1056
        %v1064 = vmul.f32 %v993, %v1056
        %v1065 = vmul.f32 %v994, %v1056
        %v1066 = vmul.f32 %v995, %v1056
        %v1067 = vmul.f32 %v996, %v1056
        %v1068 = vmul.f32 %v997, %v1056
        %v1069 = vmul.f32 %v998, %v1056
        %v1070 = vmul.f32 %v999, %v1056
        %v1071 = vmul.f32 %v1000, %v1056
        %v1072 = vmul.f32 %v1001, %v1056
        %v1073 = vmul.f32 %v1002, %v1056
        %v1074 = vmul.f32 %v1003, %v1056
        %v1075 = vmul.f32 %v1004, %v1056
        %v1076 = vmul.f32 %v1005, %v1056
        %v1077 = vmul.f32 %v1006, %v1056
        %v1078 = vmul.f32 %v1007, %v1056
        %v1079 = vmul.f32 %v1008, %v1056
        %v1080 = vmul.f32 %v1009, %v1056
        %v1081 = vmul.f32 %v1010, %v1056
        %v1082 = vmul.f32 %v1011, %v1056
        %v1083 = vmul.f32 %v1012, %v1056
        %v1084 = vmul.f32 %v1013, %v1056
        %v1085 = vmul.f32 %v1014, %v1056
        %v1086 = vmul.f32 %v1015, %v1056
        %v1087 = vmul.f32 %v1016, %v1056
        %v1088 = vmul.f32 %v1017, %v1056
        %v1089 = vmul.f32 %v1018, %v1056
        %v1090 = vmul.f32 %v1019, %v1056
        %v1091 = vmul.f32 %v1020, %v1056
        %v1092 = vmul.f32 %v1021, %v1056
        %v1093 = vmul.f32 %v1022, %v1056
        %v1094 = vmul.f32 %v1023, %v1056
        %v1095 = vmul.f32 %v1024, %v1056
        %v1096 = vmul.f32 %v1025, %v1056
        %v1097 = vmul.f32 %v1026, %v1056
        %v1098 = vmul.f32 %v1027, %v1056
        %v1099 = vmul.f32 %v1028, %v1056
        %v1100 = vmul.f32 %v1029, %v1056
        %v1101 = vmul.f32 %v1030, %v1056
        %v1102 = vmul.f32 %v1031, %v1056
        %v1103 = vmul.f32 %v1032, %v1056
        %v1104 = vmul.f32 %v1033, %v1056
        %v1105 = vmul.f32 %v1034, %v1056
        %v1106 = vmul.f32 %v1035, %v1056
        %v1107 = vmul.f32 %v1036, %v1056
        %v1108 = vmul.f32 %v1037, %v1056
        %v1109 = vmul.f32 %v1038, %v1056
        %v1110 = vmul.f32 %v1039, %v1056
        %v1111 = vmul.f32 %v1040, %v1056
        %v1112 = vmul.f32 %v1041, %v1056
        %v1113 = vmul.f32 %v1042, %v1056
        %v1114 = vmul.f32 %v1043, %v1056
        %v1115 = vmul.f32 %v1044, %v1056
        %v1116 = vmul.f32 %v1045, %v1056
        %v1117 = vmul.f32 %v1046, %v1056
        %v1118 = vmul.f32 %v1047, %v1056
        %v1119 = vmul.f32 %v1048, %v1056
        %v1120 = vmul.f32 %v1049, %v1056
        %v1121 = vmul.f32 %v1050, %v1056
        %v1122 = vld [vmem:[%s2] sm:$0x1]
        %v1124 = vlaneseq
        %v1125 = vshrl.u32 %v1124, 7
        %v1126 = vsub.s32 0, %v1125
        %v1127 = vrot.slane %v1122, %v1126
        %v1129 = vadd.f32 %v1058, %v1127
        %v1130 = vadd.f32 %v1059, %v1127
        %v1131 = vadd.f32 %v1060, %v1127
        %v1132 = vadd.f32 %v1061, %v1127
        %v1133 = vadd.f32 %v1062, %v1127
        %v1134 = vadd.f32 %v1063, %v1127
        %v1135 = vadd.f32 %v1064, %v1127
        %v1136 = vadd.f32 %v1065, %v1127
        %v1137 = vadd.f32 %v1066, %v1127
        %v1138 = vadd.f32 %v1067, %v1127
        %v1139 = vadd.f32 %v1068, %v1127
        %v1140 = vadd.f32 %v1069, %v1127
        %v1141 = vadd.f32 %v1070, %v1127
        %v1142 = vadd.f32 %v1071, %v1127
        %v1143 = vadd.f32 %v1072, %v1127
        %v1144 = vadd.f32 %v1073, %v1127
        %v1145 = vadd.f32 %v1074, %v1127
        %v1146 = vadd.f32 %v1075, %v1127
        %v1147 = vadd.f32 %v1076, %v1127
        %v1148 = vadd.f32 %v1077, %v1127
        %v1149 = vadd.f32 %v1078, %v1127
        %v1150 = vadd.f32 %v1079, %v1127
        %v1151 = vadd.f32 %v1080, %v1127
        %v1152 = vadd.f32 %v1081, %v1127
        %v1153 = vadd.f32 %v1082, %v1127
        %v1154 = vadd.f32 %v1083, %v1127
        %v1155 = vadd.f32 %v1084, %v1127
        %v1156 = vadd.f32 %v1085, %v1127
        %v1157 = vadd.f32 %v1086, %v1127
        %v1158 = vadd.f32 %v1087, %v1127
        %v1159 = vadd.f32 %v1088, %v1127
        %v1160 = vadd.f32 %v1089, %v1127
        %v1161 = vadd.f32 %v1090, %v1127
        %v1162 = vadd.f32 %v1091, %v1127
        %v1163 = vadd.f32 %v1092, %v1127
        %v1164 = vadd.f32 %v1093, %v1127
        %v1165 = vadd.f32 %v1094, %v1127
        %v1166 = vadd.f32 %v1095, %v1127
        %v1167 = vadd.f32 %v1096, %v1127
        %v1168 = vadd.f32 %v1097, %v1127
        %v1169 = vadd.f32 %v1098, %v1127
        %v1170 = vadd.f32 %v1099, %v1127
        %v1171 = vadd.f32 %v1100, %v1127
        %v1172 = vadd.f32 %v1101, %v1127
        %v1173 = vadd.f32 %v1102, %v1127
        %v1174 = vadd.f32 %v1103, %v1127
        %v1175 = vadd.f32 %v1104, %v1127
        %v1176 = vadd.f32 %v1105, %v1127
        %v1177 = vadd.f32 %v1106, %v1127
        %v1178 = vadd.f32 %v1107, %v1127
        %v1179 = vadd.f32 %v1108, %v1127
        %v1180 = vadd.f32 %v1109, %v1127
        %v1181 = vadd.f32 %v1110, %v1127
        %v1182 = vadd.f32 %v1111, %v1127
        %v1183 = vadd.f32 %v1112, %v1127
        %v1184 = vadd.f32 %v1113, %v1127
        %v1185 = vadd.f32 %v1114, %v1127
        %v1186 = vadd.f32 %v1115, %v1127
        %v1187 = vadd.f32 %v1116, %v1127
        %v1188 = vadd.f32 %v1117, %v1127
        %v1189 = vadd.f32 %v1118, %v1127
        %v1190 = vadd.f32 %v1119, %v1127
        %v1191 = vadd.f32 %v1120, %v1127
        %v1192 = vadd.f32 %v1121, %v1127
        %v1193 = vld [vmem:[%s3] sm:$0x1]
        %v1195 = vlaneseq
        %v1196 = vshrl.u32 %v1195, 7
        %v1197 = vsub.s32 0, %v1196
        %v1198 = vrot.slane %v1193, %v1197
        %v1200 = vmul.f32 %v1129, %v1198
        %v1201 = vmul.f32 %v1130, %v1198
        %v1202 = vmul.f32 %v1131, %v1198
        %v1203 = vmul.f32 %v1132, %v1198
        %v1204 = vmul.f32 %v1133, %v1198
        %v1205 = vmul.f32 %v1134, %v1198
        %v1206 = vmul.f32 %v1135, %v1198
        %v1207 = vmul.f32 %v1136, %v1198
        %v1208 = vmul.f32 %v1137, %v1198
        %v1209 = vmul.f32 %v1138, %v1198
        %v1210 = vmul.f32 %v1139, %v1198
        %v1211 = vmul.f32 %v1140, %v1198
        %v1212 = vmul.f32 %v1141, %v1198
        %v1213 = vmul.f32 %v1142, %v1198
        %v1214 = vmul.f32 %v1143, %v1198
        %v1215 = vmul.f32 %v1144, %v1198
        %v1216 = vmul.f32 %v1145, %v1198
        %v1217 = vmul.f32 %v1146, %v1198
        %v1218 = vmul.f32 %v1147, %v1198
        %v1219 = vmul.f32 %v1148, %v1198
        %v1220 = vmul.f32 %v1149, %v1198
        %v1221 = vmul.f32 %v1150, %v1198
        %v1222 = vmul.f32 %v1151, %v1198
        %v1223 = vmul.f32 %v1152, %v1198
        %v1224 = vmul.f32 %v1153, %v1198
        %v1225 = vmul.f32 %v1154, %v1198
        %v1226 = vmul.f32 %v1155, %v1198
        %v1227 = vmul.f32 %v1156, %v1198
        %v1228 = vmul.f32 %v1157, %v1198
        %v1229 = vmul.f32 %v1158, %v1198
        %v1230 = vmul.f32 %v1159, %v1198
        %v1231 = vmul.f32 %v1160, %v1198
        %v1232 = vmul.f32 %v1161, %v1198
        %v1233 = vmul.f32 %v1162, %v1198
        %v1234 = vmul.f32 %v1163, %v1198
        %v1235 = vmul.f32 %v1164, %v1198
        %v1236 = vmul.f32 %v1165, %v1198
        %v1237 = vmul.f32 %v1166, %v1198
        %v1238 = vmul.f32 %v1167, %v1198
        %v1239 = vmul.f32 %v1168, %v1198
        %v1240 = vmul.f32 %v1169, %v1198
        %v1241 = vmul.f32 %v1170, %v1198
        %v1242 = vmul.f32 %v1171, %v1198
        %v1243 = vmul.f32 %v1172, %v1198
        %v1244 = vmul.f32 %v1173, %v1198
        %v1245 = vmul.f32 %v1174, %v1198
        %v1246 = vmul.f32 %v1175, %v1198
        %v1247 = vmul.f32 %v1176, %v1198
        %v1248 = vmul.f32 %v1177, %v1198
        %v1249 = vmul.f32 %v1178, %v1198
        %v1250 = vmul.f32 %v1179, %v1198
        %v1251 = vmul.f32 %v1180, %v1198
        %v1252 = vmul.f32 %v1181, %v1198
        %v1253 = vmul.f32 %v1182, %v1198
        %v1254 = vmul.f32 %v1183, %v1198
        %v1255 = vmul.f32 %v1184, %v1198
        %v1256 = vmul.f32 %v1185, %v1198
        %v1257 = vmul.f32 %v1186, %v1198
        %v1258 = vmul.f32 %v1187, %v1198
        %v1259 = vmul.f32 %v1188, %v1198
        %v1260 = vmul.f32 %v1189, %v1198
        %v1261 = vmul.f32 %v1190, %v1198
        %v1262 = vmul.f32 %v1191, %v1198
        %v1263 = vmul.f32 %v1192, %v1198
        %1264 = vadd.xlane.f32.xlu0 %v1200
        %v1265 = vpop.xlane.xlu0 %1264
        %1266 = vadd.xlane.f32.xlu0 %v1201
        %v1267 = vpop.xlane.xlu0 %1266
        %1268 = vadd.xlane.f32.xlu0 %v1202
        %v1269 = vpop.xlane.xlu0 %1268
        %1270 = vadd.xlane.f32.xlu0 %v1203
        %v1271 = vpop.xlane.xlu0 %1270
        %1272 = vadd.xlane.f32.xlu0 %v1204
        %v1273 = vpop.xlane.xlu0 %1272
        %1274 = vadd.xlane.f32.xlu0 %v1205
        %v1275 = vpop.xlane.xlu0 %1274
        %1276 = vadd.xlane.f32.xlu0 %v1206
        %v1277 = vpop.xlane.xlu0 %1276
        %1278 = vadd.xlane.f32.xlu0 %v1207
        %v1279 = vpop.xlane.xlu0 %1278
        %1280 = vadd.xlane.f32.xlu0 %v1208
        %v1281 = vpop.xlane.xlu0 %1280
        %1282 = vadd.xlane.f32.xlu0 %v1209
        %v1283 = vpop.xlane.xlu0 %1282
        %1284 = vadd.xlane.f32.xlu0 %v1210
        %v1285 = vpop.xlane.xlu0 %1284
        %1286 = vadd.xlane.f32.xlu0 %v1211
        %v1287 = vpop.xlane.xlu0 %1286
        %1288 = vadd.xlane.f32.xlu0 %v1212
        %v1289 = vpop.xlane.xlu0 %1288
        %1290 = vadd.xlane.f32.xlu0 %v1213
        %v1291 = vpop.xlane.xlu0 %1290
        %1292 = vadd.xlane.f32.xlu0 %v1214
        %v1293 = vpop.xlane.xlu0 %1292
        %1294 = vadd.xlane.f32.xlu0 %v1215
        %v1295 = vpop.xlane.xlu0 %1294
        %1296 = vadd.xlane.f32.xlu0 %v1216
        %v1297 = vpop.xlane.xlu0 %1296
        %1298 = vadd.xlane.f32.xlu0 %v1217
        %v1299 = vpop.xlane.xlu0 %1298
        %1300 = vadd.xlane.f32.xlu0 %v1218
        %v1301 = vpop.xlane.xlu0 %1300
        %1302 = vadd.xlane.f32.xlu0 %v1219
        %v1303 = vpop.xlane.xlu0 %1302
        %1304 = vadd.xlane.f32.xlu0 %v1220
        %v1305 = vpop.xlane.xlu0 %1304
        %1306 = vadd.xlane.f32.xlu0 %v1221
        %v1307 = vpop.xlane.xlu0 %1306
        %1308 = vadd.xlane.f32.xlu0 %v1222
        %v1309 = vpop.xlane.xlu0 %1308
        %1310 = vadd.xlane.f32.xlu0 %v1223
        %v1311 = vpop.xlane.xlu0 %1310
        %1312 = vadd.xlane.f32.xlu0 %v1224
        %v1313 = vpop.xlane.xlu0 %1312
        %1314 = vadd.xlane.f32.xlu0 %v1225
        %v1315 = vpop.xlane.xlu0 %1314
        %1316 = vadd.xlane.f32.xlu0 %v1226
        %v1317 = vpop.xlane.xlu0 %1316
        %1318 = vadd.xlane.f32.xlu0 %v1227
        %v1319 = vpop.xlane.xlu0 %1318
        %1320 = vadd.xlane.f32.xlu0 %v1228
        %v1321 = vpop.xlane.xlu0 %1320
        %1322 = vadd.xlane.f32.xlu0 %v1229
        %v1323 = vpop.xlane.xlu0 %1322
        %1324 = vadd.xlane.f32.xlu0 %v1230
        %v1325 = vpop.xlane.xlu0 %1324
        %1326 = vadd.xlane.f32.xlu0 %v1231
        %v1327 = vpop.xlane.xlu0 %1326
        %1328 = vadd.xlane.f32.xlu0 %v1232
        %v1329 = vpop.xlane.xlu0 %1328
        %1330 = vadd.xlane.f32.xlu0 %v1233
        %v1331 = vpop.xlane.xlu0 %1330
        %1332 = vadd.xlane.f32.xlu0 %v1234
        %v1333 = vpop.xlane.xlu0 %1332
        %1334 = vadd.xlane.f32.xlu0 %v1235
        %v1335 = vpop.xlane.xlu0 %1334
        %1336 = vadd.xlane.f32.xlu0 %v1236
        %v1337 = vpop.xlane.xlu0 %1336
        %1338 = vadd.xlane.f32.xlu0 %v1237
        %v1339 = vpop.xlane.xlu0 %1338
        %1340 = vadd.xlane.f32.xlu0 %v1238
        %v1341 = vpop.xlane.xlu0 %1340
        %1342 = vadd.xlane.f32.xlu0 %v1239
        %v1343 = vpop.xlane.xlu0 %1342
        %1344 = vadd.xlane.f32.xlu0 %v1240
        %v1345 = vpop.xlane.xlu0 %1344
        %1346 = vadd.xlane.f32.xlu0 %v1241
        %v1347 = vpop.xlane.xlu0 %1346
        %1348 = vadd.xlane.f32.xlu0 %v1242
        %v1349 = vpop.xlane.xlu0 %1348
        %1350 = vadd.xlane.f32.xlu0 %v1243
        %v1351 = vpop.xlane.xlu0 %1350
        %1352 = vadd.xlane.f32.xlu0 %v1244
        %v1353 = vpop.xlane.xlu0 %1352
        %1354 = vadd.xlane.f32.xlu0 %v1245
        %v1355 = vpop.xlane.xlu0 %1354
        %1356 = vadd.xlane.f32.xlu0 %v1246
        %v1357 = vpop.xlane.xlu0 %1356
        %1358 = vadd.xlane.f32.xlu0 %v1247
        %v1359 = vpop.xlane.xlu0 %1358
        %1360 = vadd.xlane.f32.xlu0 %v1248
        %v1361 = vpop.xlane.xlu0 %1360
        %1362 = vadd.xlane.f32.xlu0 %v1249
        %v1363 = vpop.xlane.xlu0 %1362
        %1364 = vadd.xlane.f32.xlu0 %v1250
        %v1365 = vpop.xlane.xlu0 %1364
        %1366 = vadd.xlane.f32.xlu0 %v1251
        %v1367 = vpop.xlane.xlu0 %1366
        %1368 = vadd.xlane.f32.xlu0 %v1252
        %v1369 = vpop.xlane.xlu0 %1368
        %1370 = vadd.xlane.f32.xlu0 %v1253
        %v1371 = vpop.xlane.xlu0 %1370
        %1372 = vadd.xlane.f32.xlu0 %v1254
        %v1373 = vpop.xlane.xlu0 %1372
        %1374 = vadd.xlane.f32.xlu0 %v1255
        %v1375 = vpop.xlane.xlu0 %1374
        %1376 = vadd.xlane.f32.xlu0 %v1256
        %v1377 = vpop.xlane.xlu0 %1376
        %1378 = vadd.xlane.f32.xlu0 %v1257
        %v1379 = vpop.xlane.xlu0 %1378
        %1380 = vadd.xlane.f32.xlu0 %v1258
        %v1381 = vpop.xlane.xlu0 %1380
        %1382 = vadd.xlane.f32.xlu0 %v1259
        %v1383 = vpop.xlane.xlu0 %1382
        %1384 = vadd.xlane.f32.xlu0 %v1260
        %v1385 = vpop.xlane.xlu0 %1384
        %1386 = vadd.xlane.f32.xlu0 %v1261
        %v1387 = vpop.xlane.xlu0 %1386
        %1388 = vadd.xlane.f32.xlu0 %v1262
        %v1389 = vpop.xlane.xlu0 %1388
        %1390 = vadd.xlane.f32.xlu0 %v1263
        %v1391 = vpop.xlane.xlu0 %1390
        %v1392 = vmax.f32 %v1265, %v1267
        %v1393 = vmax.f32 %v1392, %v1269
        %v1394 = vmax.f32 %v1393, %v1271
        %v1395 = vmax.f32 %v1394, %v1273
        %v1396 = vmax.f32 %v1395, %v1275
        %v1397 = vmax.f32 %v1396, %v1277
        %v1398 = vmax.f32 %v1397, %v1279
        %v1399 = vrot.slane %v1398, 4
        %v1400 = vmax.f32 %v1398, %v1399
        %v1401 = vrot.slane %v1400, 2
        %v1402 = vmax.f32 %v1400, %v1401
        %v1403 = vrot.slane %v1402, 1
        %v1404 = vmax.f32 %v1402, %v1403
        %v1405 = vmax.f32 %v1281, %v1283
        %v1406 = vmax.f32 %v1405, %v1285
        %v1407 = vmax.f32 %v1406, %v1287
        %v1408 = vmax.f32 %v1407, %v1289
        %v1409 = vmax.f32 %v1408, %v1291
        %v1410 = vmax.f32 %v1409, %v1293
        %v1411 = vmax.f32 %v1410, %v1295
        %v1412 = vrot.slane %v1411, 4
        %v1413 = vmax.f32 %v1411, %v1412
        %v1414 = vrot.slane %v1413, 2
        %v1415 = vmax.f32 %v1413, %v1414
        %v1416 = vrot.slane %v1415, 1
        %v1417 = vmax.f32 %v1415, %v1416
        %v1418 = vmax.f32 %v1297, %v1299
        %v1419 = vmax.f32 %v1418, %v1301
        %v1420 = vmax.f32 %v1419, %v1303
        %v1421 = vmax.f32 %v1420, %v1305
        %v1422 = vmax.f32 %v1421, %v1307
        %v1423 = vmax.f32 %v1422, %v1309
        %v1424 = vmax.f32 %v1423, %v1311
        %v1425 = vrot.slane %v1424, 4
        %v1426 = vmax.f32 %v1424, %v1425
        %v1427 = vrot.slane %v1426, 2
        %v1428 = vmax.f32 %v1426, %v1427
        %v1429 = vrot.slane %v1428, 1
        %v1430 = vmax.f32 %v1428, %v1429
        %v1431 = vmax.f32 %v1313, %v1315
        %v1432 = vmax.f32 %v1431, %v1317
        %v1433 = vmax.f32 %v1432, %v1319
        %v1434 = vmax.f32 %v1433, %v1321
        %v1435 = vmax.f32 %v1434, %v1323
        %v1436 = vmax.f32 %v1435, %v1325
        %v1437 = vmax.f32 %v1436, %v1327
        %v1438 = vrot.slane %v1437, 4
        %v1439 = vmax.f32 %v1437, %v1438
        %v1440 = vrot.slane %v1439, 2
        %v1441 = vmax.f32 %v1439, %v1440
        %v1442 = vrot.slane %v1441, 1
        %v1443 = vmax.f32 %v1441, %v1442
        %v1444 = vmax.f32 %v1329, %v1331
        %v1445 = vmax.f32 %v1444, %v1333
        %v1446 = vmax.f32 %v1445, %v1335
        %v1447 = vmax.f32 %v1446, %v1337
        %v1448 = vmax.f32 %v1447, %v1339
        %v1449 = vmax.f32 %v1448, %v1341
        %v1450 = vmax.f32 %v1449, %v1343
        %v1451 = vrot.slane %v1450, 4
        %v1452 = vmax.f32 %v1450, %v1451
        %v1453 = vrot.slane %v1452, 2
        %v1454 = vmax.f32 %v1452, %v1453
        %v1455 = vrot.slane %v1454, 1
        %v1456 = vmax.f32 %v1454, %v1455
        %v1457 = vmax.f32 %v1345, %v1347
        %v1458 = vmax.f32 %v1457, %v1349
        %v1459 = vmax.f32 %v1458, %v1351
        %v1460 = vmax.f32 %v1459, %v1353
        %v1461 = vmax.f32 %v1460, %v1355
        %v1462 = vmax.f32 %v1461, %v1357
        %v1463 = vmax.f32 %v1462, %v1359
        %v1464 = vrot.slane %v1463, 4
        %v1465 = vmax.f32 %v1463, %v1464
        %v1466 = vrot.slane %v1465, 2
        %v1467 = vmax.f32 %v1465, %v1466
        %v1468 = vrot.slane %v1467, 1
        %v1469 = vmax.f32 %v1467, %v1468
        %v1470 = vmax.f32 %v1361, %v1363
        %v1471 = vmax.f32 %v1470, %v1365
        %v1472 = vmax.f32 %v1471, %v1367
        %v1473 = vmax.f32 %v1472, %v1369
        %v1474 = vmax.f32 %v1473, %v1371
        %v1475 = vmax.f32 %v1474, %v1373
        %v1476 = vmax.f32 %v1475, %v1375
        %v1477 = vrot.slane %v1476, 4
        %v1478 = vmax.f32 %v1476, %v1477
        %v1479 = vrot.slane %v1478, 2
        %v1480 = vmax.f32 %v1478, %v1479
        %v1481 = vrot.slane %v1480, 1
        %v1482 = vmax.f32 %v1480, %v1481
        %v1483 = vmax.f32 %v1377, %v1379
        %v1484 = vmax.f32 %v1483, %v1381
        %v1485 = vmax.f32 %v1484, %v1383
        %v1486 = vmax.f32 %v1485, %v1385
        %v1487 = vmax.f32 %v1486, %v1387
        %v1488 = vmax.f32 %v1487, %v1389
        %v1489 = vmax.f32 %v1488, %v1391
        %v1490 = vrot.slane %v1489, 4
        %v1491 = vmax.f32 %v1489, %v1490
        %v1492 = vrot.slane %v1491, 2
        %v1493 = vmax.f32 %v1491, %v1492
        %v1494 = vrot.slane %v1493, 1
        %v1495 = vmax.f32 %v1493, %v1494
        %v1496 = vsub.f32 %v1265, %v1404
        %v1497 = vsub.f32 %v1267, %v1404
        %v1498 = vsub.f32 %v1269, %v1404
        %v1499 = vsub.f32 %v1271, %v1404
        %v1500 = vsub.f32 %v1273, %v1404
        %v1501 = vsub.f32 %v1275, %v1404
        %v1502 = vsub.f32 %v1277, %v1404
        %v1503 = vsub.f32 %v1279, %v1404
        %v1504 = vsub.f32 %v1281, %v1417
        %v1505 = vsub.f32 %v1283, %v1417
        %v1506 = vsub.f32 %v1285, %v1417
        %v1507 = vsub.f32 %v1287, %v1417
        %v1508 = vsub.f32 %v1289, %v1417
        %v1509 = vsub.f32 %v1291, %v1417
        %v1510 = vsub.f32 %v1293, %v1417
        %v1511 = vsub.f32 %v1295, %v1417
        %v1512 = vsub.f32 %v1297, %v1430
        %v1513 = vsub.f32 %v1299, %v1430
        %v1514 = vsub.f32 %v1301, %v1430
        %v1515 = vsub.f32 %v1303, %v1430
        %v1516 = vsub.f32 %v1305, %v1430
        %v1517 = vsub.f32 %v1307, %v1430
        %v1518 = vsub.f32 %v1309, %v1430
        %v1519 = vsub.f32 %v1311, %v1430
        %v1520 = vsub.f32 %v1313, %v1443
        %v1521 = vsub.f32 %v1315, %v1443
        %v1522 = vsub.f32 %v1317, %v1443
        %v1523 = vsub.f32 %v1319, %v1443
        %v1524 = vsub.f32 %v1321, %v1443
        %v1525 = vsub.f32 %v1323, %v1443
        %v1526 = vsub.f32 %v1325, %v1443
        %v1527 = vsub.f32 %v1327, %v1443
        %v1528 = vsub.f32 %v1329, %v1456
        %v1529 = vsub.f32 %v1331, %v1456
        %v1530 = vsub.f32 %v1333, %v1456
        %v1531 = vsub.f32 %v1335, %v1456
        %v1532 = vsub.f32 %v1337, %v1456
        %v1533 = vsub.f32 %v1339, %v1456
        %v1534 = vsub.f32 %v1341, %v1456
        %v1535 = vsub.f32 %v1343, %v1456
        %v1536 = vsub.f32 %v1345, %v1469
        %v1537 = vsub.f32 %v1347, %v1469
        %v1538 = vsub.f32 %v1349, %v1469
        %v1539 = vsub.f32 %v1351, %v1469
        %v1540 = vsub.f32 %v1353, %v1469
        %v1541 = vsub.f32 %v1355, %v1469
        %v1542 = vsub.f32 %v1357, %v1469
        %v1543 = vsub.f32 %v1359, %v1469
        %v1544 = vsub.f32 %v1361, %v1482
        %v1545 = vsub.f32 %v1363, %v1482
        %v1546 = vsub.f32 %v1365, %v1482
        %v1547 = vsub.f32 %v1367, %v1482
        %v1548 = vsub.f32 %v1369, %v1482
        %v1549 = vsub.f32 %v1371, %v1482
        %v1550 = vsub.f32 %v1373, %v1482
        %v1551 = vsub.f32 %v1375, %v1482
        %v1552 = vsub.f32 %v1377, %v1495
        %v1553 = vsub.f32 %v1379, %v1495
        %v1554 = vsub.f32 %v1381, %v1495
        %v1555 = vsub.f32 %v1383, %v1495
        %v1556 = vsub.f32 %v1385, %v1495
        %v1557 = vsub.f32 %v1387, %v1495
        %v1558 = vsub.f32 %v1389, %v1495
        %v1559 = vsub.f32 %v1391, %v1495
        %v1560 = vmul.f32 %v1496, 1.442695
        %v1561 = vpow.pop %v1560
        %v1562 = vmul.f32 %v1497, 1.442695
        %v1563 = vpow.pop %v1562
        %v1564 = vmul.f32 %v1498, 1.442695
        %v1565 = vpow.pop %v1564
        %v1566 = vmul.f32 %v1499, 1.442695
        %v1567 = vpow.pop %v1566
        %v1568 = vmul.f32 %v1500, 1.442695
        %v1569 = vpow.pop %v1568
        %v1570 = vmul.f32 %v1501, 1.442695
        %v1571 = vpow.pop %v1570
        %v1572 = vmul.f32 %v1502, 1.442695
        %v1573 = vpow.pop %v1572
        %v1574 = vmul.f32 %v1503, 1.442695
        %v1575 = vpow.pop %v1574
        %v1576 = vmul.f32 %v1504, 1.442695
        %v1577 = vpow.pop %v1576
        %v1578 = vmul.f32 %v1505, 1.442695
        %v1579 = vpow.pop %v1578
        %v1580 = vmul.f32 %v1506, 1.442695
        %v1581 = vpow.pop %v1580
        %v1582 = vmul.f32 %v1507, 1.442695
        %v1583 = vpow.pop %v1582
        %v1584 = vmul.f32 %v1508, 1.442695
        %v1585 = vpow.pop %v1584
        %v1586 = vmul.f32 %v1509, 1.442695
        %v1587 = vpow.pop %v1586
        %v1588 = vmul.f32 %v1510, 1.442695
        %v1589 = vpow.pop %v1588
        %v1590 = vmul.f32 %v1511, 1.442695
        %v1591 = vpow.pop %v1590
        %v1592 = vmul.f32 %v1512, 1.442695
        %v1593 = vpow.pop %v1592
        %v1594 = vmul.f32 %v1513, 1.442695
        %v1595 = vpow.pop %v1594
        %v1596 = vmul.f32 %v1514, 1.442695
        %v1597 = vpow.pop %v1596
        %v1598 = vmul.f32 %v1515, 1.442695
        %v1599 = vpow.pop %v1598
        %v1600 = vmul.f32 %v1516, 1.442695
        %v1601 = vpow.pop %v1600
        %v1602 = vmul.f32 %v1517, 1.442695
        %v1603 = vpow.pop %v1602
        %v1604 = vmul.f32 %v1518, 1.442695
        %v1605 = vpow.pop %v1604
        %v1606 = vmul.f32 %v1519, 1.442695
        %v1607 = vpow.pop %v1606
        %v1608 = vmul.f32 %v1520, 1.442695
        %v1609 = vpow.pop %v1608
        %v1610 = vmul.f32 %v1521, 1.442695
        %v1611 = vpow.pop %v1610
        %v1612 = vmul.f32 %v1522, 1.442695
        %v1613 = vpow.pop %v1612
        %v1614 = vmul.f32 %v1523, 1.442695
        %v1615 = vpow.pop %v1614
        %v1616 = vmul.f32 %v1524, 1.442695
        %v1617 = vpow.pop %v1616
        %v1618 = vmul.f32 %v1525, 1.442695
        %v1619 = vpow.pop %v1618
        %v1620 = vmul.f32 %v1526, 1.442695
        %v1621 = vpow.pop %v1620
        %v1622 = vmul.f32 %v1527, 1.442695
        %v1623 = vpow.pop %v1622
        %v1624 = vmul.f32 %v1528, 1.442695
        %v1625 = vpow.pop %v1624
        %v1626 = vmul.f32 %v1529, 1.442695
        %v1627 = vpow.pop %v1626
        %v1628 = vmul.f32 %v1530, 1.442695
        %v1629 = vpow.pop %v1628
        %v1630 = vmul.f32 %v1531, 1.442695
        %v1631 = vpow.pop %v1630
        %v1632 = vmul.f32 %v1532, 1.442695
        %v1633 = vpow.pop %v1632
        %v1634 = vmul.f32 %v1533, 1.442695
        %v1635 = vpow.pop %v1634
        %v1636 = vmul.f32 %v1534, 1.442695
        %v1637 = vpow.pop %v1636
        %v1638 = vmul.f32 %v1535, 1.442695
        %v1639 = vpow.pop %v1638
        %v1640 = vmul.f32 %v1536, 1.442695
        %v1641 = vpow.pop %v1640
        %v1642 = vmul.f32 %v1537, 1.442695
        %v1643 = vpow.pop %v1642
        %v1644 = vmul.f32 %v1538, 1.442695
        %v1645 = vpow.pop %v1644
        %v1646 = vmul.f32 %v1539, 1.442695
        %v1647 = vpow.pop %v1646
        %v1648 = vmul.f32 %v1540, 1.442695
        %v1649 = vpow.pop %v1648
        %v1650 = vmul.f32 %v1541, 1.442695
        %v1651 = vpow.pop %v1650
        %v1652 = vmul.f32 %v1542, 1.442695
        %v1653 = vpow.pop %v1652
        %v1654 = vmul.f32 %v1543, 1.442695
        %v1655 = vpow.pop %v1654
        %v1656 = vmul.f32 %v1544, 1.442695
        %v1657 = vpow.pop %v1656
        %v1658 = vmul.f32 %v1545, 1.442695
        %v1659 = vpow.pop %v1658
        %v1660 = vmul.f32 %v1546, 1.442695
        %v1661 = vpow.pop %v1660
        %v1662 = vmul.f32 %v1547, 1.442695
        %v1663 = vpow.pop %v1662
        %v1664 = vmul.f32 %v1548, 1.442695
        %v1665 = vpow.pop %v1664
        %v1666 = vmul.f32 %v1549, 1.442695
        %v1667 = vpow.pop %v1666
        %v1668 = vmul.f32 %v1550, 1.442695
        %v1669 = vpow.pop %v1668
        %v1670 = vmul.f32 %v1551, 1.442695
        %v1671 = vpow.pop %v1670
        %v1672 = vmul.f32 %v1552, 1.442695
        %v1673 = vpow.pop %v1672
        %v1674 = vmul.f32 %v1553, 1.442695
        %v1675 = vpow.pop %v1674
        %v1676 = vmul.f32 %v1554, 1.442695
        %v1677 = vpow.pop %v1676
        %v1678 = vmul.f32 %v1555, 1.442695
        %v1679 = vpow.pop %v1678
        %v1680 = vmul.f32 %v1556, 1.442695
        %v1681 = vpow.pop %v1680
        %v1682 = vmul.f32 %v1557, 1.442695
        %v1683 = vpow.pop %v1682
        %v1684 = vmul.f32 %v1558, 1.442695
        %v1685 = vpow.pop %v1684
        %v1686 = vmul.f32 %v1559, 1.442695
        %v1687 = vpow.pop %v1686
        %v1688 = vadd.f32 %v1561, %v1563
        %v1689 = vadd.f32 %v1688, %v1565
        %v1690 = vadd.f32 %v1689, %v1567
        %v1691 = vadd.f32 %v1690, %v1569
        %v1692 = vadd.f32 %v1691, %v1571
        %v1693 = vadd.f32 %v1692, %v1573
        %v1694 = vadd.f32 %v1693, %v1575
        %v1695 = vrot.slane %v1694, 4
        %v1696 = vadd.f32 %v1694, %v1695
        %v1697 = vrot.slane %v1696, 2
        %v1698 = vadd.f32 %v1696, %v1697
        %v1699 = vrot.slane %v1698, 1
        %v1700 = vadd.f32 %v1698, %v1699
        %v1701 = vadd.f32 %v1577, %v1579
        %v1702 = vadd.f32 %v1701, %v1581
        %v1703 = vadd.f32 %v1702, %v1583
        %v1704 = vadd.f32 %v1703, %v1585
        %v1705 = vadd.f32 %v1704, %v1587
        %v1706 = vadd.f32 %v1705, %v1589
        %v1707 = vadd.f32 %v1706, %v1591
        %v1708 = vrot.slane %v1707, 4
        %v1709 = vadd.f32 %v1707, %v1708
        %v1710 = vrot.slane %v1709, 2
        %v1711 = vadd.f32 %v1709, %v1710
        %v1712 = vrot.slane %v1711, 1
        %v1713 = vadd.f32 %v1711, %v1712
        %v1714 = vadd.f32 %v1593, %v1595
        %v1715 = vadd.f32 %v1714, %v1597
        %v1716 = vadd.f32 %v1715, %v1599
        %v1717 = vadd.f32 %v1716, %v1601
        %v1718 = vadd.f32 %v1717, %v1603
        %v1719 = vadd.f32 %v1718, %v1605
        %v1720 = vadd.f32 %v1719, %v1607
        %v1721 = vrot.slane %v1720, 4
        %v1722 = vadd.f32 %v1720, %v1721
        %v1723 = vrot.slane %v1722, 2
        %v1724 = vadd.f32 %v1722, %v1723
        %v1725 = vrot.slane %v1724, 1
        %v1726 = vadd.f32 %v1724, %v1725
        %v1727 = vadd.f32 %v1609, %v1611
        %v1728 = vadd.f32 %v1727, %v1613
        %v1729 = vadd.f32 %v1728, %v1615
        %v1730 = vadd.f32 %v1729, %v1617
        %v1731 = vadd.f32 %v1730, %v1619
        %v1732 = vadd.f32 %v1731, %v1621
        %v1733 = vadd.f32 %v1732, %v1623
        %v1734 = vrot.slane %v1733, 4
        %v1735 = vadd.f32 %v1733, %v1734
        %v1736 = vrot.slane %v1735, 2
        %v1737 = vadd.f32 %v1735, %v1736
        %v1738 = vrot.slane %v1737, 1
        %v1739 = vadd.f32 %v1737, %v1738
        %v1740 = vadd.f32 %v1625, %v1627
        %v1741 = vadd.f32 %v1740, %v1629
        %v1742 = vadd.f32 %v1741, %v1631
        %v1743 = vadd.f32 %v1742, %v1633
        %v1744 = vadd.f32 %v1743, %v1635
        %v1745 = vadd.f32 %v1744, %v1637
        %v1746 = vadd.f32 %v1745, %v1639
        %v1747 = vrot.slane %v1746, 4
        %v1748 = vadd.f32 %v1746, %v1747
        %v1749 = vrot.slane %v1748, 2
        %v1750 = vadd.f32 %v1748, %v1749
        %v1751 = vrot.slane %v1750, 1
        %v1752 = vadd.f32 %v1750, %v1751
        %v1753 = vadd.f32 %v1641, %v1643
        %v1754 = vadd.f32 %v1753, %v1645
        %v1755 = vadd.f32 %v1754, %v1647
        %v1756 = vadd.f32 %v1755, %v1649
        %v1757 = vadd.f32 %v1756, %v1651
        %v1758 = vadd.f32 %v1757, %v1653
        %v1759 = vadd.f32 %v1758, %v1655
        %v1760 = vrot.slane %v1759, 4
        %v1761 = vadd.f32 %v1759, %v1760
        %v1762 = vrot.slane %v1761, 2
        %v1763 = vadd.f32 %v1761, %v1762
        %v1764 = vrot.slane %v1763, 1
        %v1765 = vadd.f32 %v1763, %v1764
        %v1766 = vadd.f32 %v1657, %v1659
        %v1767 = vadd.f32 %v1766, %v1661
        %v1768 = vadd.f32 %v1767, %v1663
        %v1769 = vadd.f32 %v1768, %v1665
        %v1770 = vadd.f32 %v1769, %v1667
        %v1771 = vadd.f32 %v1770, %v1669
        %v1772 = vadd.f32 %v1771, %v1671
        %v1773 = vrot.slane %v1772, 4
        %v1774 = vadd.f32 %v1772, %v1773
        %v1775 = vrot.slane %v1774, 2
        %v1776 = vadd.f32 %v1774, %v1775
        %v1777 = vrot.slane %v1776, 1
        %v1778 = vadd.f32 %v1776, %v1777
        %v1779 = vadd.f32 %v1673, %v1675
        %v1780 = vadd.f32 %v1779, %v1677
        %v1781 = vadd.f32 %v1780, %v1679
        %v1782 = vadd.f32 %v1781, %v1681
        %v1783 = vadd.f32 %v1782, %v1683
        %v1784 = vadd.f32 %v1783, %v1685
        %v1785 = vadd.f32 %v1784, %v1687
        %v1786 = vrot.slane %v1785, 4
        %v1787 = vadd.f32 %v1785, %v1786
        %v1788 = vrot.slane %v1787, 2
        %v1789 = vadd.f32 %v1787, %v1788
        %v1790 = vrot.slane %v1789, 1
        %v1791 = vadd.f32 %v1789, %v1790
        %v1792 = vrcp.pop %v1700
        %v1793 = vrcp.pop %v1713
        %v1794 = vrcp.pop %v1726
        %v1795 = vrcp.pop %v1739
        %v1796 = vrcp.pop %v1752
        %v1797 = vrcp.pop %v1765
        %v1798 = vrcp.pop %v1778
        %v1799 = vrcp.pop %v1791
        %v1800 = vmul.f32 %v1561, %v1792
        %v1801 = vmul.f32 %v1563, %v1792
        %v1802 = vmul.f32 %v1565, %v1792
        %v1803 = vmul.f32 %v1567, %v1792
        %v1804 = vmul.f32 %v1569, %v1792
        %v1805 = vmul.f32 %v1571, %v1792
        %v1806 = vmul.f32 %v1573, %v1792
        %v1807 = vmul.f32 %v1575, %v1792
        %v1808 = vmul.f32 %v1577, %v1793
        %v1809 = vmul.f32 %v1579, %v1793
        %v1810 = vmul.f32 %v1581, %v1793
        %v1811 = vmul.f32 %v1583, %v1793
        %v1812 = vmul.f32 %v1585, %v1793
        %v1813 = vmul.f32 %v1587, %v1793
        %v1814 = vmul.f32 %v1589, %v1793
        %v1815 = vmul.f32 %v1591, %v1793
        %v1816 = vmul.f32 %v1593, %v1794
        %v1817 = vmul.f32 %v1595, %v1794
        %v1818 = vmul.f32 %v1597, %v1794
        %v1819 = vmul.f32 %v1599, %v1794
        %v1820 = vmul.f32 %v1601, %v1794
        %v1821 = vmul.f32 %v1603, %v1794
        %v1822 = vmul.f32 %v1605, %v1794
        %v1823 = vmul.f32 %v1607, %v1794
        %v1824 = vmul.f32 %v1609, %v1795
        %v1825 = vmul.f32 %v1611, %v1795
        %v1826 = vmul.f32 %v1613, %v1795
        %v1827 = vmul.f32 %v1615, %v1795
        %v1828 = vmul.f32 %v1617, %v1795
        %v1829 = vmul.f32 %v1619, %v1795
        %v1830 = vmul.f32 %v1621, %v1795
        %v1831 = vmul.f32 %v1623, %v1795
        %v1832 = vmul.f32 %v1625, %v1796
        %v1833 = vmul.f32 %v1627, %v1796
        %v1834 = vmul.f32 %v1629, %v1796
        %v1835 = vmul.f32 %v1631, %v1796
        %v1836 = vmul.f32 %v1633, %v1796
        %v1837 = vmul.f32 %v1635, %v1796
        %v1838 = vmul.f32 %v1637, %v1796
        %v1839 = vmul.f32 %v1639, %v1796
        %v1840 = vmul.f32 %v1641, %v1797
        %v1841 = vmul.f32 %v1643, %v1797
        %v1842 = vmul.f32 %v1645, %v1797
        %v1843 = vmul.f32 %v1647, %v1797
        %v1844 = vmul.f32 %v1649, %v1797
        %v1845 = vmul.f32 %v1651, %v1797
        %v1846 = vmul.f32 %v1653, %v1797
        %v1847 = vmul.f32 %v1655, %v1797
        %v1848 = vmul.f32 %v1657, %v1798
        %v1849 = vmul.f32 %v1659, %v1798
        %v1850 = vmul.f32 %v1661, %v1798
        %v1851 = vmul.f32 %v1663, %v1798
        %v1852 = vmul.f32 %v1665, %v1798
        %v1853 = vmul.f32 %v1667, %v1798
        %v1854 = vmul.f32 %v1669, %v1798
        %v1855 = vmul.f32 %v1671, %v1798
        %v1856 = vmul.f32 %v1673, %v1799
        %v1857 = vmul.f32 %v1675, %v1799
        %v1858 = vmul.f32 %v1677, %v1799
        %v1859 = vmul.f32 %v1679, %v1799
        %v1860 = vmul.f32 %v1681, %v1799
        %v1861 = vmul.f32 %v1683, %v1799
        %v1862 = vmul.f32 %v1685, %v1799
        %v1863 = vmul.f32 %v1687, %v1799
        %v1864 = vld [vmem:[%s4] sm:$0xff]
        %v1865 = vld [vmem:[%s4 + $0x8] sm:$0xff]
        %v1866 = vld [vmem:[%s4 + $0x10] sm:$0xff]
        %v1867 = vld [vmem:[%s4 + $0x18] sm:$0xff]
        %v1868 = vld [vmem:[%s4 + $0x20] sm:$0xff]
        %v1869 = vld [vmem:[%s4 + $0x28] sm:$0xff]
        %v1870 = vld [vmem:[%s4 + $0x30] sm:$0xff]
        %v1871 = vld [vmem:[%s4 + $0x38] sm:$0xff]
        %v1872 = vld [vmem:[%s4 + $0x40] sm:$0xff]
        %v1873 = vld [vmem:[%s4 + $0x48] sm:$0xff]
        %v1874 = vld [vmem:[%s4 + $0x50] sm:$0xff]
        %v1875 = vld [vmem:[%s4 + $0x58] sm:$0xff]
        %v1876 = vld [vmem:[%s4 + $0x60] sm:$0xff]
        %v1877 = vld [vmem:[%s4 + $0x68] sm:$0xff]
        %v1878 = vld [vmem:[%s4 + $0x70] sm:$0xff]
        %v1879 = vld [vmem:[%s4 + $0x78] sm:$0xff]
        %1880 = vmatprep.subr.mxu0 0.0
        %1881 = vmatpush1.msra.mxu0 %v1864
        %1882 = vmatprep.subr.mxu0 0.0
        %1883 = vmatpush1.msra.mxu0 %v1865
        %1884 = vmatprep.subr.mxu0 0.0
        %1885 = vmatpush1.msra.mxu0 %v1866
        %1886 = vmatprep.subr.mxu0 0.0
        %1887 = vmatpush1.msra.mxu0 %v1867
        %1888 = vmatprep.subr.mxu0 0.0
        %1889 = vmatpush1.msra.mxu0 %v1868
        %1890 = vmatprep.subr.mxu0 0.0
        %1891 = vmatpush1.msra.mxu0 %v1869
        %1892 = vmatprep.subr.mxu0 0.0
        %1893 = vmatpush1.msra.mxu0 %v1870
        %1894 = vmatprep.subr.mxu0 0.0
        %1895 = vmatpush1.msra.mxu0 %v1871
        %1896 = vmatprep.subr.mxu0 0.0
        %1897 = vmatpush1.msra.mxu0 %v1872
        %1898 = vmatprep.subr.mxu0 0.0
        %1899 = vmatpush1.msra.mxu0 %v1873
        %1900 = vmatprep.subr.mxu0 0.0
        %1901 = vmatpush1.msra.mxu0 %v1874
        %1902 = vmatprep.subr.mxu0 0.0
        %1903 = vmatpush1.msra.mxu0 %v1875
        %1904 = vmatprep.subr.mxu0 0.0
        %1905 = vmatpush1.msra.mxu0 %v1876
        %1906 = vmatprep.subr.mxu0 0.0
        %1907 = vmatpush1.msra.mxu0 %v1877
        %1908 = vmatprep.subr.mxu0 0.0
        %1909 = vmatpush1.msra.mxu0 %v1878
        %1910 = vmatprep.subr.mxu0 0.0
        %1911 = vmatpush1.msra.mxu0 %v1879
        %1912 = vmatprep.subr.mxu0 0.0
        %1913 = vmatpush1.msra.mxu0 0.0
        %1914 = vmatprep.subr.mxu0 0.0
        %1915 = vmatpush1.msra.mxu0 0.0
        %1916 = vmatprep.subr.mxu0 0.0
        %1917 = vmatpush1.msra.mxu0 0.0
        %1918 = vmatprep.subr.mxu0 0.0
        %1919 = vmatpush1.msra.mxu0 0.0
        %1920 = vmatprep.subr.mxu0 0.0
        %1921 = vmatpush1.msra.mxu0 0.0
        %1922 = vmatprep.subr.mxu0 0.0
        %1923 = vmatpush1.msra.mxu0 0.0
        %1924 = vmatprep.subr.mxu0 0.0
        %1925 = vmatpush1.msra.mxu0 0.0
        %1926 = vmatprep.subr.mxu0 0.0
        %1927 = vmatpush1.msra.mxu0 0.0
        %1928 = vmatprep.subr.mxu0 0.0
        %1929 = vmatpush1.msra.mxu0 0.0
        %1930 = vmatprep.subr.mxu0 0.0
        %1931 = vmatpush1.msra.mxu0 0.0
        %1932 = vmatprep.subr.mxu0 0.0
        %1933 = vmatpush1.msra.mxu0 0.0
        %1934 = vmatprep.subr.mxu0 0.0
        %1935 = vmatpush1.msra.mxu0 0.0
        %1936 = vmatprep.subr.mxu0 0.0
        %1937 = vmatpush1.msra.mxu0 0.0
        %1938 = vmatprep.subr.mxu0 0.0
        %1939 = vmatpush1.msra.mxu0 0.0
        %1940 = vmatprep.subr.mxu0 0.0
        %1941 = vmatpush1.msra.mxu0 0.0
        %1942 = vmatprep.subr.mxu0 0.0
        %1943 = vmatpush1.msra.mxu0 0.0
        %1944 = vmatprep.mubr.f32.mxu0 0.0
        %1945 = vmatmul.mubr.f32.gmra.mrb[0].mxu0 %v1129
        %v1946 = vpop.f32.mrb[0].mxu0
        %v1947 = vadd.f32 0.0, %v1946
        %v1948 = vpop.f32.mrb[0].mxu0
        %1949 = vmatprep.mubr.f32.mxu0 0.0
        %1950 = vmatmul.mubr.f32.gmra.mrb[0].mxu0 %v1130
        %v1951 = vpop.f32.mrb[0].mxu0
        %v1952 = vadd.f32 0.0, %v1951
        %v1953 = vpop.f32.mrb[0].mxu0
        %1954 = vmatprep.mubr.f32.mxu0 0.0
        %1955 = vmatmul.mubr.f32.gmra.mrb[0].mxu0 %v1131
        %v1956 = vpop.f32.mrb[0].mxu0
        %v1957 = vadd.f32 0.0, %v1956
        %v1958 = vpop.f32.mrb[0].mxu0
        %1959 = vmatprep.mubr.f32.mxu0 0.0
        %1960 = vmatmul.mubr.f32.gmra.mrb[0].mxu0 %v1132
        %v1961 = vpop.f32.mrb[0].mxu0
        %v1962 = vadd.f32 0.0, %v1961
        %v1963 = vpop.f32.mrb[0].mxu0
        %1964 = vmatprep.mubr.f32.mxu0 0.0
        %1965 = vmatmul.mubr.f32.gmra.mrb[0].mxu0 %v1133
        %v1966 = vpop.f32.mrb[0].mxu0
        %v1967 = vadd.f32 0.0, %v1966
        %v1968 = vpop.f32.mrb[0].mxu0
        %1969 = vmatprep.mubr.f32.mxu0 0.0
        %1970 = vmatmul.mubr.f32.gmra.mrb[0].mxu0 %v1134
        %v1971 = vpop.f32.mrb[0].mxu0
        %v1972 = vadd.f32 0.0, %v1971
        %v1973 = vpop.f32.mrb[0].mxu0
        %1974 = vmatprep.mubr.f32.mxu0 0.0
        %1975 = vmatmul.mubr.f32.gmra.mrb[0].mxu0 %v1135
        %v1976 = vpop.f32.mrb[0].mxu0
        %v1977 = vadd.f32 0.0, %v1976
        %v1978 = vpop.f32.mrb[0].mxu0
        %1979 = vmatprep.mubr.f32.mxu0 0.0
        %1980 = vmatmul.mubr.f32.gmra.mrb[0].mxu0 %v1136
        %v1981 = vpop.f32.mrb[0].mxu0
        %v1982 = vadd.f32 0.0, %v1981
        %v1983 = vpop.f32.mrb[0].mxu0
        %1984 = vmatprep.mubr.f32.mxu0 0.0
        %1985 = vmatmul.mubr.f32.gmra.mrb[0].mxu0 %v1137
        %v1986 = vpop.f32.mrb[0].mxu0
        %v1987 = vadd.f32 0.0, %v1986
        %v1988 = vpop.f32.mrb[0].mxu0
        %1989 = vmatprep.mubr.f32.mxu0 0.0
        %1990 = vmatmul.mubr.f32.gmra.mrb[0].mxu0 %v1138
        %v1991 = vpop.f32.mrb[0].mxu0
        %v1992 = vadd.f32 0.0, %v1991
        %v1993 = vpop.f32.mrb[0].mxu0
        %1994 = vmatprep.mubr.f32.mxu0 0.0
        %1995 = vmatmul.mubr.f32.gmra.mrb[0].mxu0 %v1139
        %v1996 = vpop.f32.mrb[0].mxu0
        %v1997 = vadd.f32 0.0, %v1996
        %v1998 = vpop.f32.mrb[0].mxu0
        %1999 = vmatprep.mubr.f32.mxu0 0.0
        %2000 = vmatmul.mubr.f32.gmra.mrb[0].mxu0 %v1140
        %v2001 = vpop.f32.mrb[0].mxu0
        %v2002 = vadd.f32 0.0, %v2001
        %v2003 = vpop.f32.mrb[0].mxu0
        %2004 = vmatprep.mubr.f32.mxu0 0.0
        %2005 = vmatmul.mubr.f32.gmra.mrb[0].mxu0 %v1141
        %v2006 = vpop.f32.mrb[0].mxu0
        %v2007 = vadd.f32 0.0, %v2006
        %v2008 = vpop.f32.mrb[0].mxu0
        %2009 = vmatprep.mubr.f32.mxu0 0.0
        %2010 = vmatmul.mubr.f32.gmra.mrb[0].mxu0 %v1142
        %v2011 = vpop.f32.mrb[0].mxu0
        %v2012 = vadd.f32 0.0, %v2011
        %v2013 = vpop.f32.mrb[0].mxu0
        %2014 = vmatprep.mubr.f32.mxu0 0.0
        %2015 = vmatmul.mubr.f32.gmra.mrb[0].mxu0 %v1143
        %v2016 = vpop.f32.mrb[0].mxu0
        %v2017 = vadd.f32 0.0, %v2016
        %v2018 = vpop.f32.mrb[0].mxu0
        %2019 = vmatprep.mubr.f32.mxu0 0.0
        %2020 = vmatmul.mubr.f32.gmra.mrb[0].mxu0 %v1144
        %v2021 = vpop.f32.mrb[0].mxu0
        %v2022 = vadd.f32 0.0, %v2021
        %v2023 = vpop.f32.mrb[0].mxu0
        %2024 = vmatprep.mubr.f32.mxu0 0.0
        %2025 = vmatmul.mubr.f32.gmra.mrb[0].mxu0 %v1145
        %v2026 = vpop.f32.mrb[0].mxu0
        %v2027 = vadd.f32 0.0, %v2026
        %v2028 = vpop.f32.mrb[0].mxu0
        %2029 = vmatprep.mubr.f32.mxu0 0.0
        %2030 = vmatmul.mubr.f32.gmra.mrb[0].mxu0 %v1146
        %v2031 = vpop.f32.mrb[0].mxu0
        %v2032 = vadd.f32 0.0, %v2031
        %v2033 = vpop.f32.mrb[0].mxu0
        %2034 = vmatprep.mubr.f32.mxu0 0.0
        %2035 = vmatmul.mubr.f32.gmra.mrb[0].mxu0 %v1147
        %v2036 = vpop.f32.mrb[0].mxu0
        %v2037 = vadd.f32 0.0, %v2036
        %v2038 = vpop.f32.mrb[0].mxu0
        %2039 = vmatprep.mubr.f32.mxu0 0.0
        %2040 = vmatmul.mubr.f32.gmra.mrb[0].mxu0 %v1148
        %v2041 = vpop.f32.mrb[0].mxu0
        %v2042 = vadd.f32 0.0, %v2041
        %v2043 = vpop.f32.mrb[0].mxu0
        %2044 = vmatprep.mubr.f32.mxu0 0.0
        %2045 = vmatmul.mubr.f32.gmra.mrb[0].mxu0 %v1149
        %v2046 = vpop.f32.mrb[0].mxu0
        %v2047 = vadd.f32 0.0, %v2046
        %v2048 = vpop.f32.mrb[0].mxu0
        %2049 = vmatprep.mubr.f32.mxu0 0.0
        %2050 = vmatmul.mubr.f32.gmra.mrb[0].mxu0 %v1150
        %v2051 = vpop.f32.mrb[0].mxu0
        %v2052 = vadd.f32 0.0, %v2051
        %v2053 = vpop.f32.mrb[0].mxu0
        %2054 = vmatprep.mubr.f32.mxu0 0.0
        %2055 = vmatmul.mubr.f32.gmra.mrb[0].mxu0 %v1151
        %v2056 = vpop.f32.mrb[0].mxu0
        %v2057 = vadd.f32 0.0, %v2056
        %v2058 = vpop.f32.mrb[0].mxu0
        %2059 = vmatprep.mubr.f32.mxu0 0.0
        %2060 = vmatmul.mubr.f32.gmra.mrb[0].mxu0 %v1152
        %v2061 = vpop.f32.mrb[0].mxu0
        %v2062 = vadd.f32 0.0, %v2061
        %v2063 = vpop.f32.mrb[0].mxu0
        %2064 = vmatprep.mubr.f32.mxu0 0.0
        %2065 = vmatmul.mubr.f32.gmra.mrb[0].mxu0 %v1153
        %v2066 = vpop.f32.mrb[0].mxu0
        %v2067 = vadd.f32 0.0, %v2066
        %v2068 = vpop.f32.mrb[0].mxu0
        %2069 = vmatprep.mubr.f32.mxu0 0.0
        %2070 = vmatmul.mubr.f32.gmra.mrb[0].mxu0 %v1154
        %v2071 = vpop.f32.mrb[0].mxu0
        %v2072 = vadd.f32 0.0, %v2071
        %v2073 = vpop.f32.mrb[0].mxu0
        %2074 = vmatprep.mubr.f32.mxu0 0.0
        %2075 = vmatmul.mubr.f32.gmra.mrb[0].mxu0 %v1155
        %v2076 = vpop.f32.mrb[0].mxu0
        %v2077 = vadd.f32 0.0, %v2076
        %v2078 = vpop.f32.mrb[0].mxu0
        %2079 = vmatprep.mubr.f32.mxu0 0.0
        %2080 = vmatmul.mubr.f32.gmra.mrb[0].mxu0 %v1156
        %v2081 = vpop.f32.mrb[0].mxu0
        %v2082 = vadd.f32 0.0, %v2081
        %v2083 = vpop.f32.mrb[0].mxu0
        %2084 = vmatprep.mubr.f32.mxu0 0.0
        %2085 = vmatmul.mubr.f32.gmra.mrb[0].mxu0 %v1157
        %v2086 = vpop.f32.mrb[0].mxu0
        %v2087 = vadd.f32 0.0, %v2086
        %v2088 = vpop.f32.mrb[0].mxu0
        %2089 = vmatprep.mubr.f32.mxu0 0.0
        %2090 = vmatmul.mubr.f32.gmra.mrb[0].mxu0 %v1158
        %v2091 = vpop.f32.mrb[0].mxu0
        %v2092 = vadd.f32 0.0, %v2091
        %v2093 = vpop.f32.mrb[0].mxu0
        %2094 = vmatprep.mubr.f32.mxu0 0.0
        %2095 = vmatmul.mubr.f32.gmra.mrb[0].mxu0 %v1159
        %v2096 = vpop.f32.mrb[0].mxu0
        %v2097 = vadd.f32 0.0, %v2096
        %v2098 = vpop.f32.mrb[0].mxu0
        %2099 = vmatprep.mubr.f32.mxu0 0.0
        %2100 = vmatmul.mubr.f32.gmra.mrb[0].mxu0 %v1160
        %v2101 = vpop.f32.mrb[0].mxu0
        %v2102 = vadd.f32 0.0, %v2101
        %v2103 = vpop.f32.mrb[0].mxu0
        %2104 = vmatprep.mubr.f32.mxu0 0.0
        %2105 = vmatmul.mubr.f32.gmra.mrb[0].mxu0 %v1161
        %v2106 = vpop.f32.mrb[0].mxu0
        %v2107 = vadd.f32 0.0, %v2106
        %v2108 = vpop.f32.mrb[0].mxu0
        %2109 = vmatprep.mubr.f32.mxu0 0.0
        %2110 = vmatmul.mubr.f32.gmra.mrb[0].mxu0 %v1162
        %v2111 = vpop.f32.mrb[0].mxu0
        %v2112 = vadd.f32 0.0, %v2111
        %v2113 = vpop.f32.mrb[0].mxu0
        %2114 = vmatprep.mubr.f32.mxu0 0.0
        %2115 = vmatmul.mubr.f32.gmra.mrb[0].mxu0 %v1163
        %v2116 = vpop.f32.mrb[0].mxu0
        %v2117 = vadd.f32 0.0, %v2116
        %v2118 = vpop.f32.mrb[0].mxu0
        %2119 = vmatprep.mubr.f32.mxu0 0.0
        %2120 = vmatmul.mubr.f32.gmra.mrb[0].mxu0 %v1164
        %v2121 = vpop.f32.mrb[0].mxu0
        %v2122 = vadd.f32 0.0, %v2121
        %v2123 = vpop.f32.mrb[0].mxu0
        %2124 = vmatprep.mubr.f32.mxu0 0.0
        %2125 = vmatmul.mubr.f32.gmra.mrb[0].mxu0 %v1165
        %v2126 = vpop.f32.mrb[0].mxu0
        %v2127 = vadd.f32 0.0, %v2126
        %v2128 = vpop.f32.mrb[0].mxu0
        %2129 = vmatprep.mubr.f32.mxu0 0.0
        %2130 = vmatmul.mubr.f32.gmra.mrb[0].mxu0 %v1166
        %v2131 = vpop.f32.mrb[0].mxu0
        %v2132 = vadd.f32 0.0, %v2131
        %v2133 = vpop.f32.mrb[0].mxu0
        %2134 = vmatprep.mubr.f32.mxu0 0.0
        %2135 = vmatmul.mubr.f32.gmra.mrb[0].mxu0 %v1167
        %v2136 = vpop.f32.mrb[0].mxu0
        %v2137 = vadd.f32 0.0, %v2136
        %v2138 = vpop.f32.mrb[0].mxu0
        %2139 = vmatprep.mubr.f32.mxu0 0.0
        %2140 = vmatmul.mubr.f32.gmra.mrb[0].mxu0 %v1168
        %v2141 = vpop.f32.mrb[0].mxu0
        %v2142 = vadd.f32 0.0, %v2141
        %v2143 = vpop.f32.mrb[0].mxu0
        %2144 = vmatprep.mubr.f32.mxu0 0.0
        %2145 = vmatmul.mubr.f32.gmra.mrb[0].mxu0 %v1169
        %v2146 = vpop.f32.mrb[0].mxu0
        %v2147 = vadd.f32 0.0, %v2146
        %v2148 = vpop.f32.mrb[0].mxu0
        %2149 = vmatprep.mubr.f32.mxu0 0.0
        %2150 = vmatmul.mubr.f32.gmra.mrb[0].mxu0 %v1170
        %v2151 = vpop.f32.mrb[0].mxu0
        %v2152 = vadd.f32 0.0, %v2151
        %v2153 = vpop.f32.mrb[0].mxu0
        %2154 = vmatprep.mubr.f32.mxu0 0.0
        %2155 = vmatmul.mubr.f32.gmra.mrb[0].mxu0 %v1171
        %v2156 = vpop.f32.mrb[0].mxu0
        %v2157 = vadd.f32 0.0, %v2156
        %v2158 = vpop.f32.mrb[0].mxu0
        %2159 = vmatprep.mubr.f32.mxu0 0.0
        %2160 = vmatmul.mubr.f32.gmra.mrb[0].mxu0 %v1172
        %v2161 = vpop.f32.mrb[0].mxu0
        %v2162 = vadd.f32 0.0, %v2161
        %v2163 = vpop.f32.mrb[0].mxu0
        %2164 = vmatprep.mubr.f32.mxu0 0.0
        %2165 = vmatmul.mubr.f32.gmra.mrb[0].mxu0 %v1173
        %v2166 = vpop.f32.mrb[0].mxu0
        %v2167 = vadd.f32 0.0, %v2166
        %v2168 = vpop.f32.mrb[0].mxu0
        %2169 = vmatprep.mubr.f32.mxu0 0.0
        %2170 = vmatmul.mubr.f32.gmra.mrb[0].mxu0 %v1174
        %v2171 = vpop.f32.mrb[0].mxu0
        %v2172 = vadd.f32 0.0, %v2171
        %v2173 = vpop.f32.mrb[0].mxu0
        %2174 = vmatprep.mubr.f32.mxu0 0.0
        %2175 = vmatmul.mubr.f32.gmra.mrb[0].mxu0 %v1175
        %v2176 = vpop.f32.mrb[0].mxu0
        %v2177 = vadd.f32 0.0, %v2176
        %v2178 = vpop.f32.mrb[0].mxu0
        %2179 = vmatprep.mubr.f32.mxu0 0.0
        %2180 = vmatmul.mubr.f32.gmra.mrb[0].mxu0 %v1176
        %v2181 = vpop.f32.mrb[0].mxu0
        %v2182 = vadd.f32 0.0, %v2181
        %v2183 = vpop.f32.mrb[0].mxu0
        %2184 = vmatprep.mubr.f32.mxu0 0.0
        %2185 = vmatmul.mubr.f32.gmra.mrb[0].mxu0 %v1177
        %v2186 = vpop.f32.mrb[0].mxu0
        %v2187 = vadd.f32 0.0, %v2186
        %v2188 = vpop.f32.mrb[0].mxu0
        %2189 = vmatprep.mubr.f32.mxu0 0.0
        %2190 = vmatmul.mubr.f32.gmra.mrb[0].mxu0 %v1178
        %v2191 = vpop.f32.mrb[0].mxu0
        %v2192 = vadd.f32 0.0, %v2191
        %v2193 = vpop.f32.mrb[0].mxu0
        %2194 = vmatprep.mubr.f32.mxu0 0.0
        %2195 = vmatmul.mubr.f32.gmra.mrb[0].mxu0 %v1179
        %v2196 = vpop.f32.mrb[0].mxu0
        %v2197 = vadd.f32 0.0, %v2196
        %v2198 = vpop.f32.mrb[0].mxu0
        %2199 = vmatprep.mubr.f32.mxu0 0.0
        %2200 = vmatmul.mubr.f32.gmra.mrb[0].mxu0 %v1180
        %v2201 = vpop.f32.mrb[0].mxu0
        %v2202 = vadd.f32 0.0, %v2201
        %v2203 = vpop.f32.mrb[0].mxu0
        %2204 = vmatprep.mubr.f32.mxu0 0.0
        %2205 = vmatmul.mubr.f32.gmra.mrb[0].mxu0 %v1181
        %v2206 = vpop.f32.mrb[0].mxu0
        %v2207 = vadd.f32 0.0, %v2206
        %v2208 = vpop.f32.mrb[0].mxu0
        %2209 = vmatprep.mubr.f32.mxu0 0.0
        %2210 = vmatmul.mubr.f32.gmra.mrb[0].mxu0 %v1182
        %v2211 = vpop.f32.mrb[0].mxu0
        %v2212 = vadd.f32 0.0, %v2211
        %v2213 = vpop.f32.mrb[0].mxu0
        %2214 = vmatprep.mubr.f32.mxu0 0.0
        %2215 = vmatmul.mubr.f32.gmra.mrb[0].mxu0 %v1183
        %v2216 = vpop.f32.mrb[0].mxu0
        %v2217 = vadd.f32 0.0, %v2216
        %v2218 = vpop.f32.mrb[0].mxu0
        %2219 = vmatprep.mubr.f32.mxu0 0.0
        %2220 = vmatmul.mubr.f32.gmra.mrb[0].mxu0 %v1184
        %v2221 = vpop.f32.mrb[0].mxu0
        %v2222 = vadd.f32 0.0, %v2221
        %v2223 = vpop.f32.mrb[0].mxu0
        %2224 = vmatprep.mubr.f32.mxu0 0.0
        %2225 = vmatmul.mubr.f32.gmra.mrb[0].mxu0 %v1185
        %v2226 = vpop.f32.mrb[0].mxu0
        %v2227 = vadd.f32 0.0, %v2226
        %v2228 = vpop.f32.mrb[0].mxu0
        %2229 = vmatprep.mubr.f32.mxu0 0.0
        %2230 = vmatmul.mubr.f32.gmra.mrb[0].mxu0 %v1186
        %v2231 = vpop.f32.mrb[0].mxu0
        %v2232 = vadd.f32 0.0, %v2231
        %v2233 = vpop.f32.mrb[0].mxu0
        %2234 = vmatprep.mubr.f32.mxu0 0.0
        %2235 = vmatmul.mubr.f32.gmra.mrb[0].mxu0 %v1187
        %v2236 = vpop.f32.mrb[0].mxu0
        %v2237 = vadd.f32 0.0, %v2236
        %v2238 = vpop.f32.mrb[0].mxu0
        %2239 = vmatprep.mubr.f32.mxu0 0.0
        %2240 = vmatmul.mubr.f32.gmra.mrb[0].mxu0 %v1188
        %v2241 = vpop.f32.mrb[0].mxu0
        %v2242 = vadd.f32 0.0, %v2241
        %v2243 = vpop.f32.mrb[0].mxu0
        %2244 = vmatprep.mubr.f32.mxu0 0.0
        %2245 = vmatmul.mubr.f32.gmra.mrb[0].mxu0 %v1189
        %v2246 = vpop.f32.mrb[0].mxu0
        %v2247 = vadd.f32 0.0, %v2246
        %v2248 = vpop.f32.mrb[0].mxu0
        %2249 = vmatprep.mubr.f32.mxu0 0.0
        %2250 = vmatmul.mubr.f32.gmra.mrb[0].mxu0 %v1190
        %v2251 = vpop.f32.mrb[0].mxu0
        %v2252 = vadd.f32 0.0, %v2251
        %v2253 = vpop.f32.mrb[0].mxu0
        %2254 = vmatprep.mubr.f32.mxu0 0.0
        %2255 = vmatmul.mubr.f32.gmra.mrb[0].mxu0 %v1191
        %v2256 = vpop.f32.mrb[0].mxu0
        %v2257 = vadd.f32 0.0, %v2256
        %v2258 = vpop.f32.mrb[0].mxu0
        %2259 = vmatprep.mubr.f32.mxu0 0.0
        %2260 = vmatmul.mubr.f32.gmra.mrb[0].mxu0 %v1192
        %v2261 = vpop.f32.mrb[0].mxu0
        %v2262 = vadd.f32 0.0, %v2261
        %v2263 = vpop.f32.mrb[0].mxu0
        %2264 = vdwg.mxu0
        %v2265 = vmul.f32 %v1800, %v1947
        %v2266 = vmul.f32 %v1801, %v1952
        %v2267 = vmul.f32 %v1802, %v1957
        %v2268 = vmul.f32 %v1803, %v1962
        %v2269 = vmul.f32 %v1804, %v1967
        %v2270 = vmul.f32 %v1805, %v1972
        %v2271 = vmul.f32 %v1806, %v1977
        %v2272 = vmul.f32 %v1807, %v1982
        %v2273 = vmul.f32 %v1808, %v1987
        %v2274 = vmul.f32 %v1809, %v1992
        %v2275 = vmul.f32 %v1810, %v1997
        %v2276 = vmul.f32 %v1811, %v2002
        %v2277 = vmul.f32 %v1812, %v2007
        %v2278 = vmul.f32 %v1813, %v2012
        %v2279 = vmul.f32 %v1814, %v2017
        %v2280 = vmul.f32 %v1815, %v2022
        %v2281 = vmul.f32 %v1816, %v2027
        %v2282 = vmul.f32 %v1817, %v2032
        %v2283 = vmul.f32 %v1818, %v2037
        %v2284 = vmul.f32 %v1819, %v2042
        %v2285 = vmul.f32 %v1820, %v2047
        %v2286 = vmul.f32 %v1821, %v2052
        %v2287 = vmul.f32 %v1822, %v2057
        %v2288 = vmul.f32 %v1823, %v2062
        %v2289 = vmul.f32 %v1824, %v2067
        %v2290 = vmul.f32 %v1825, %v2072
        %v2291 = vmul.f32 %v1826, %v2077
        %v2292 = vmul.f32 %v1827, %v2082
        %v2293 = vmul.f32 %v1828, %v2087
        %v2294 = vmul.f32 %v1829, %v2092
        %v2295 = vmul.f32 %v1830, %v2097
        %v2296 = vmul.f32 %v1831, %v2102
        %v2297 = vmul.f32 %v1832, %v2107
        %v2298 = vmul.f32 %v1833, %v2112
        %v2299 = vmul.f32 %v1834, %v2117
        %v2300 = vmul.f32 %v1835, %v2122
        %v2301 = vmul.f32 %v1836, %v2127
        %v2302 = vmul.f32 %v1837, %v2132
        %v2303 = vmul.f32 %v1838, %v2137
        %v2304 = vmul.f32 %v1839, %v2142
        %v2305 = vmul.f32 %v1840, %v2147
        %v2306 = vmul.f32 %v1841, %v2152
        %v2307 = vmul.f32 %v1842, %v2157
        %v2308 = vmul.f32 %v1843, %v2162
        %v2309 = vmul.f32 %v1844, %v2167
        %v2310 = vmul.f32 %v1845, %v2172
        %v2311 = vmul.f32 %v1846, %v2177
        %v2312 = vmul.f32 %v1847, %v2182
        %v2313 = vmul.f32 %v1848, %v2187
        %v2314 = vmul.f32 %v1849, %v2192
        %v2315 = vmul.f32 %v1850, %v2197
        %v2316 = vmul.f32 %v1851, %v2202
        %v2317 = vmul.f32 %v1852, %v2207
        %v2318 = vmul.f32 %v1853, %v2212
        %v2319 = vmul.f32 %v1854, %v2217
        %v2320 = vmul.f32 %v1855, %v2222
        %v2321 = vmul.f32 %v1856, %v2227
        %v2322 = vmul.f32 %v1857, %v2232
        %v2323 = vmul.f32 %v1858, %v2237
        %v2324 = vmul.f32 %v1859, %v2242
        %v2325 = vmul.f32 %v1860, %v2247
        %v2326 = vmul.f32 %v1861, %v2252
        %v2327 = vmul.f32 %v1862, %v2257
        %v2328 = vmul.f32 %v1863, %v2262
        %v2329 = vadd.f32 %v2265, %v2266
        %v2330 = vadd.f32 %v2329, %v2267
        %v2331 = vadd.f32 %v2330, %v2268
        %v2332 = vadd.f32 %v2331, %v2269
        %v2333 = vadd.f32 %v2332, %v2270
        %v2334 = vadd.f32 %v2333, %v2271
        %v2335 = vadd.f32 %v2334, %v2272
        %v2336 = vrot.slane %v2335, 4
        %v2337 = vadd.f32 %v2335, %v2336
        %v2338 = vrot.slane %v2337, 2
        %v2339 = vadd.f32 %v2337, %v2338
        %v2340 = vrot.slane %v2339, 1
        %v2341 = vadd.f32 %v2339, %v2340
        %v2342 = vadd.f32 %v2273, %v2274
        %v2343 = vadd.f32 %v2342, %v2275
        %v2344 = vadd.f32 %v2343, %v2276
        %v2345 = vadd.f32 %v2344, %v2277
        %v2346 = vadd.f32 %v2345, %v2278
        %v2347 = vadd.f32 %v2346, %v2279
        %v2348 = vadd.f32 %v2347, %v2280
        %v2349 = vrot.slane %v2348, 4
        %v2350 = vadd.f32 %v2348, %v2349
        %v2351 = vrot.slane %v2350, 2
        %v2352 = vadd.f32 %v2350, %v2351
        %v2353 = vrot.slane %v2352, 1
        %v2354 = vadd.f32 %v2352, %v2353
        %v2355 = vadd.f32 %v2281, %v2282
        %v2356 = vadd.f32 %v2355, %v2283
        %v2357 = vadd.f32 %v2356, %v2284
        %v2358 = vadd.f32 %v2357, %v2285
        %v2359 = vadd.f32 %v2358, %v2286
        %v2360 = vadd.f32 %v2359, %v2287
        %v2361 = vadd.f32 %v2360, %v2288
        %v2362 = vrot.slane %v2361, 4
        %v2363 = vadd.f32 %v2361, %v2362
        %v2364 = vrot.slane %v2363, 2
        %v2365 = vadd.f32 %v2363, %v2364
        %v2366 = vrot.slane %v2365, 1
        %v2367 = vadd.f32 %v2365, %v2366
        %v2368 = vadd.f32 %v2289, %v2290
        %v2369 = vadd.f32 %v2368, %v2291
        %v2370 = vadd.f32 %v2369, %v2292
        %v2371 = vadd.f32 %v2370, %v2293
        %v2372 = vadd.f32 %v2371, %v2294
        %v2373 = vadd.f32 %v2372, %v2295
        %v2374 = vadd.f32 %v2373, %v2296
        %v2375 = vrot.slane %v2374, 4
        %v2376 = vadd.f32 %v2374, %v2375
        %v2377 = vrot.slane %v2376, 2
        %v2378 = vadd.f32 %v2376, %v2377
        %v2379 = vrot.slane %v2378, 1
        %v2380 = vadd.f32 %v2378, %v2379
        %v2381 = vadd.f32 %v2297, %v2298
        %v2382 = vadd.f32 %v2381, %v2299
        %v2383 = vadd.f32 %v2382, %v2300
        %v2384 = vadd.f32 %v2383, %v2301
        %v2385 = vadd.f32 %v2384, %v2302
        %v2386 = vadd.f32 %v2385, %v2303
        %v2387 = vadd.f32 %v2386, %v2304
        %v2388 = vrot.slane %v2387, 4
        %v2389 = vadd.f32 %v2387, %v2388
        %v2390 = vrot.slane %v2389, 2
        %v2391 = vadd.f32 %v2389, %v2390
        %v2392 = vrot.slane %v2391, 1
        %v2393 = vadd.f32 %v2391, %v2392
        %v2394 = vadd.f32 %v2305, %v2306
        %v2395 = vadd.f32 %v2394, %v2307
        %v2396 = vadd.f32 %v2395, %v2308
        %v2397 = vadd.f32 %v2396, %v2309
        %v2398 = vadd.f32 %v2397, %v2310
        %v2399 = vadd.f32 %v2398, %v2311
        %v2400 = vadd.f32 %v2399, %v2312
        %v2401 = vrot.slane %v2400, 4
        %v2402 = vadd.f32 %v2400, %v2401
        %v2403 = vrot.slane %v2402, 2
        %v2404 = vadd.f32 %v2402, %v2403
        %v2405 = vrot.slane %v2404, 1
        %v2406 = vadd.f32 %v2404, %v2405
        %v2407 = vadd.f32 %v2313, %v2314
        %v2408 = vadd.f32 %v2407, %v2315
        %v2409 = vadd.f32 %v2408, %v2316
        %v2410 = vadd.f32 %v2409, %v2317
        %v2411 = vadd.f32 %v2410, %v2318
        %v2412 = vadd.f32 %v2411, %v2319
        %v2413 = vadd.f32 %v2412, %v2320
        %v2414 = vrot.slane %v2413, 4
        %v2415 = vadd.f32 %v2413, %v2414
        %v2416 = vrot.slane %v2415, 2
        %v2417 = vadd.f32 %v2415, %v2416
        %v2418 = vrot.slane %v2417, 1
        %v2419 = vadd.f32 %v2417, %v2418
        %v2420 = vadd.f32 %v2321, %v2322
        %v2421 = vadd.f32 %v2420, %v2323
        %v2422 = vadd.f32 %v2421, %v2324
        %v2423 = vadd.f32 %v2422, %v2325
        %v2424 = vadd.f32 %v2423, %v2326
        %v2425 = vadd.f32 %v2424, %v2327
        %v2426 = vadd.f32 %v2425, %v2328
        %v2427 = vrot.slane %v2426, 4
        %v2428 = vadd.f32 %v2426, %v2427
        %v2429 = vrot.slane %v2428, 2
        %v2430 = vadd.f32 %v2428, %v2429
        %v2431 = vrot.slane %v2430, 1
        %v2432 = vadd.f32 %v2430, %v2431
        %v2433 = vld [vmem:[%s5] sm:$0xff]
        %v2434 = vld [vmem:[%s5 + $0x8] sm:$0xff]
        %v2435 = vld [vmem:[%s5 + $0x10] sm:$0xff]
        %v2436 = vld [vmem:[%s5 + $0x18] sm:$0xff]
        %v2437 = vld [vmem:[%s5 + $0x20] sm:$0xff]
        %v2438 = vld [vmem:[%s5 + $0x28] sm:$0xff]
        %v2439 = vld [vmem:[%s5 + $0x30] sm:$0xff]
        %v2440 = vld [vmem:[%s5 + $0x38] sm:$0xff]
        %v2441 = vld [vmem:[%s5 + $0x40] sm:$0xff]
        %v2442 = vld [vmem:[%s5 + $0x48] sm:$0xff]
        %v2443 = vld [vmem:[%s5 + $0x50] sm:$0xff]
        %v2444 = vld [vmem:[%s5 + $0x58] sm:$0xff]
        %v2445 = vld [vmem:[%s5 + $0x60] sm:$0xff]
        %v2446 = vld [vmem:[%s5 + $0x68] sm:$0xff]
        %v2447 = vld [vmem:[%s5 + $0x70] sm:$0xff]
        %v2448 = vld [vmem:[%s5 + $0x78] sm:$0xff]
        %v2449 = vld [vmem:[%s6] sm:$0x1]
        %v2451 = vlaneseq
        %v2452 = vshrl.u32 %v2451, 7
        %v2453 = vsub.s32 0, %v2452
        %v2454 = vrot.slane %v2449, %v2453
        %vm2464 = vcmask 1041409
        %v2465 = vsel %vm2464, %v2354, %v2341
        %vm2466 = vcmask 1042434
        %v2467 = vsel %vm2466, %v2367, %v2465
        %vm2468 = vcmask 1043459
        %v2469 = vsel %vm2468, %v2380, %v2467
        %vm2470 = vcmask 1044484
        %v2471 = vsel %vm2470, %v2393, %v2469
        %vm2472 = vcmask 1045509
        %v2473 = vsel %vm2472, %v2406, %v2471
        %vm2474 = vcmask 1046534
        %v2475 = vsel %vm2474, %v2419, %v2473
        %vm2476 = vcmask 1047559
        %v2477 = vsel %vm2476, %v2432, %v2475
        %2479 = vmatprep.subr.mxu0 0.0
        %2480 = vmatpush1.msra.mxu0 %v2433
        %2481 = vmatprep.subr.mxu0 0.0
        %2482 = vmatpush1.msra.mxu0 %v2434
        %2483 = vmatprep.subr.mxu0 0.0
        %2484 = vmatpush1.msra.mxu0 %v2435
        %2485 = vmatprep.subr.mxu0 0.0
        %2486 = vmatpush1.msra.mxu0 %v2436
        %2487 = vmatprep.subr.mxu0 0.0
        %2488 = vmatpush1.msra.mxu0 %v2437
        %2489 = vmatprep.subr.mxu0 0.0
        %2490 = vmatpush1.msra.mxu0 %v2438
        %2491 = vmatprep.subr.mxu0 0.0
        %2492 = vmatpush1.msra.mxu0 %v2439
        %2493 = vmatprep.subr.mxu0 0.0
        %2494 = vmatpush1.msra.mxu0 %v2440
        %2495 = vmatprep.subr.mxu0 0.0
        %2496 = vmatpush1.msra.mxu0 %v2441
        %2497 = vmatprep.subr.mxu0 0.0
        %2498 = vmatpush1.msra.mxu0 %v2442
        %2499 = vmatprep.subr.mxu0 0.0
        %2500 = vmatpush1.msra.mxu0 %v2443
        %2501 = vmatprep.subr.mxu0 0.0
        %2502 = vmatpush1.msra.mxu0 %v2444
        %2503 = vmatprep.subr.mxu0 0.0
        %2504 = vmatpush1.msra.mxu0 %v2445
        %2505 = vmatprep.subr.mxu0 0.0
        %2506 = vmatpush1.msra.mxu0 %v2446
        %2507 = vmatprep.subr.mxu0 0.0
        %2508 = vmatpush1.msra.mxu0 %v2447
        %2509 = vmatprep.subr.mxu0 0.0
        %2510 = vmatpush1.msra.mxu0 %v2448
        %2511 = vmatprep.subr.mxu0 0.0
        %2512 = vmatpush1.msra.mxu0 0.0
        %2513 = vmatprep.subr.mxu0 0.0
        %2514 = vmatpush1.msra.mxu0 0.0
        %2515 = vmatprep.subr.mxu0 0.0
        %2516 = vmatpush1.msra.mxu0 0.0
        %2517 = vmatprep.subr.mxu0 0.0
        %2518 = vmatpush1.msra.mxu0 0.0
        %2519 = vmatprep.subr.mxu0 0.0
        %2520 = vmatpush1.msra.mxu0 0.0
        %2521 = vmatprep.subr.mxu0 0.0
        %2522 = vmatpush1.msra.mxu0 0.0
        %2523 = vmatprep.subr.mxu0 0.0
        %2524 = vmatpush1.msra.mxu0 0.0
        %2525 = vmatprep.subr.mxu0 0.0
        %2526 = vmatpush1.msra.mxu0 0.0
        %2527 = vmatprep.subr.mxu0 0.0
        %2528 = vmatpush1.msra.mxu0 0.0
        %2529 = vmatprep.subr.mxu0 0.0
        %2530 = vmatpush1.msra.mxu0 0.0
        %2531 = vmatprep.subr.mxu0 0.0
        %2532 = vmatpush1.msra.mxu0 0.0
        %2533 = vmatprep.subr.mxu0 0.0
        %2534 = vmatpush1.msra.mxu0 0.0
        %2535 = vmatprep.subr.mxu0 0.0
        %2536 = vmatpush1.msra.mxu0 0.0
        %2537 = vmatprep.subr.mxu0 0.0
        %2538 = vmatpush1.msra.mxu0 0.0
        %2539 = vmatprep.subr.mxu0 0.0
        %2540 = vmatpush1.msra.mxu0 0.0
        %2541 = vmatprep.subr.mxu0 0.0
        %2542 = vmatpush1.msra.mxu0 0.0
        %2543 = vmatprep.mubr.f32.mxu0 0.0
        %2544 = vmatmul.mubr.f32.gmra.mrb[0].mxu0 %v2477
        %v2545 = vpop.f32.mrb[0].mxu0
        %v2546 = vadd.f32 %v2454, %v2545
        %v2547 = vpop.f32.mrb[0].mxu0
        %2548 = vdwg.mxu0
        %2549 = vst [vmem:[%s274] sm:$0xff] %v2546
        %s2550 = sand.u32 %s181, 1
        %s2551 = scalar_lea.sflag [#allocation3], %s2550
        %s2552 = sand.u32 %s181, 1
        %s2553 = smul.addr %s2552, 8
        %s2554 = scalar_lea.vmem [#allocation2], %s2553
        // Predicated region
        $region49: #{attention_pool2d.1} parent=47 // pred_check
          %p2555 = pneg %p191
        $region50: #{attention_pool2d.1} parent=47 // pred_check_branch
          %2557 = sbr.rel (%p2555) target = $region52
        $region51: #{attention_pool2d.1} parent=47 // pred_region
          %s2559 = ssub.s32 128, 128
          %2560 = vsyncadd %s2551, %s2559
          %s2561 = smul.addr %s21, 128
          %s2562 = scalar_lea.hbm %s7, %s2561
          %s2564 = sshll.u32 %s2554, 4
          %s2565 = int_to_ptr.vmem [resolvable:$true] %s2564
          %2567 = dma.vmem_to_hbm [thread:$0]  %s2565, 128, %s2562, %s2551
        $region52: #{attention_pool2d.1} parent=47 // pred_fallthru
          _
      $region48: #{attention_pool2d.1} parent=5 // pred_fallthru
        _
      %p2568 = scmp.le.s32.totalorder 2, %s16
      // Predicated region
      $region53: #{attention_pool2d.1} parent=5 // pred_check
        %p2569 = pneg %p2568
      $region54: #{attention_pool2d.1} parent=5 // pred_check_branch
        %2571 = sbr.rel (%p2569) target = $region56
      $region55: #{attention_pool2d.1} parent=5 // pred_region
        %s2572 = ssub.s32 %s16, 2
        // Predicated region
        $region57: #{attention_pool2d.1} parent=55 // pred_check
          %p2573 = pneg %p197
        $region58: #{attention_pool2d.1} parent=55 // pred_check_branch
          %2575 = sbr.rel (%p2573) target = $region60
        $region59: #{attention_pool2d.1} parent=55 // pred_region
          %s2576 = sand.u32 %s182, 1
          %s2577 = scalar_lea.sflag [#allocation3], %s2576
          %s2578 = sand.u32 %s182, 1
          %s2579 = smul.addr %s2578, 8
          %s2580 = scalar_lea.vmem [#allocation2], %s2579
          %2581 = dma.done %s2577, 128
        $region60: #{attention_pool2d.1} parent=55 // pred_fallthru
          _
      $region56: #{attention_pool2d.1} parent=5 // pred_fallthru
        _
    $region6: #{attention_pool2d.1} parent=1 // loop_footer
      %s20 = sadd.s32 1, %s16
    $region7: #{attention_pool2d.1} parent=1 // loop_footer_branch
      %15 = sbr.rel target = $region3
    $region8: #{attention_pool2d.1} parent=1 // loop_exit
      _
    %2582 = vsyncpa [#allocation3], 1
    %s2583 = scalar_lea.sflag [#allocation3], 1
    %2584 = vsyncpa %s2583, 1

</llo_original>
